<compile_context>
chip_gen: v5e
topology: v5e:2x2
jax: 0.10.0
libtpu: 0.0.40
codegen_flags: <defaults>
</compile_context>

<pallas_src>
import jax
import jax.numpy as jnp
from jax.experimental import pallas as pl
from jax.experimental.pallas import tpu as pltpu

HIDDEN = 32
NUM_LAYERS = 2      # kernel below is specialized for the module's numlayer = 2
FC2 = 64
LANES = 128


def _round8(n):
    return -(-n // 8) * 8


def _slab_layout(statesize):
    """Row offsets (8-aligned) for each parameter segment in the packed slab."""
    segs = [
        ("w1", statesize), ("b1", 1),
        ("wih0", HIDDEN), ("whh0", HIDDEN), ("bl0", 1),
        ("wih1", HIDDEN), ("whh1", HIDDEN), ("bl1", 1),
        ("w2", HIDDEN), ("b2", 1),
        ("w3", FC2), ("b3", 1),
    ]
    offs = {}
    r = 0
    for name, rows in segs:
        offs[name] = (r, rows)
        r += _round8(rows)
    return offs, r


def _pad_to(a, rows):
    r, c = a.shape
    return jnp.pad(a.astype(jnp.float32), ((0, rows - r), (0, LANES - c)))


# ------------------------------ fused Net kernel -------------------------------
def _make_net_kernel(T, offs):
    H = HIDDEN
    H4 = 4 * H

    def seg(slab_ref, name):
        o, rows = offs[name]
        return slab_ref[o:o + rows, :]      # static, 8-row-aligned slice

    def kernel(x_ref, slab_ref, hc_ref, out_ref, hcT_ref, ys0_ref, ys1_ref):
        # Constants for the sigmoid-via-tanh fixup (i/f/o gate columns were
        # pre-scaled by 0.5 inside the slab): sigmoid(x) = 0.5*tanh(x/2) + 0.5.
        lane = jax.lax.broadcasted_iota(jnp.int32, (1, H4), 1)
        is_g = (lane >= 2 * H) & (lane < 3 * H)
        post_scale = jnp.where(is_g, 1.0, 0.5).astype(jnp.float32)
        post_bias = jnp.where(is_g, 0.0, 0.5).astype(jnp.float32)

        # ---- fc1 + ReLU, batched over T (padded to 128 lanes; cols >= H are 0)
        w1 = seg(slab_ref, "w1")                                     # (S, 128)
        b1 = seg(slab_ref, "b1")                                     # (1, 128)
        x1 = jnp.maximum(
            jnp.dot(x_ref[...], w1, preferred_element_type=jnp.float32) + b1, 0.0)
        x1 = x1[:, :H]                                               # (T, H)

        def lstm_pass(pre, whh, h, c, ys_ref):
            # pre: (T, 4H) batched input projection (+bias), gates pre-scaled.
            # Serial path per step: one (1,32)@(32,128) matmul, one tanh over
            # the full gate vreg, one fma, then the cell update + tanh(c).
            for t in range(T):   # static unroll: T is small & known at trace time
                g = pre[t:t + 1, :] + jnp.dot(
                    h, whh, preferred_element_type=jnp.float32)
                act = jnp.tanh(g) * post_scale + post_bias
                i_g = act[:, 0:H]
                f_g = act[:, H:2 * H]
                g_g = act[:, 2 * H:3 * H]
                o_g = act[:, 3 * H:4 * H]
                c = f_g * c + i_g * g_g
                h = o_g * jnp.tanh(c)
                ys_ref[t:t + 1, :] = h          # cheap masked row store
            return h, c

        # ---- layer 0: hoisted batched input projection, then serial recurrence
        pre0 = jnp.dot(x1, seg(slab_ref, "wih0"),
                       preferred_element_type=jnp.float32) + seg(slab_ref, "bl0")
        h0, c0 = lstm_pass(pre0, seg(slab_ref, "whh0"),
                           hc_ref[0:1, :], hc_ref[2:3, :], ys0_ref)
        hcT_ref[0:1, :] = h0
        hcT_ref[2:3, :] = c0

        # ---- layer 1: batched input projection over all layer-0 outputs
        pre1 = jnp.dot(ys0_ref[...], seg(slab_ref, "wih1"),
                       preferred_element_type=jnp.float32) + seg(slab_ref, "bl1")
        h1, c1 = lstm_pass(pre1, seg(slab_ref, "whh1"),
                           hc_ref[1:2, :], hc_ref[3:4, :], ys1_ref)
        hcT_ref[1:2, :] = h1
        hcT_ref[3:4, :] = c1

        # ---- fc2 + ReLU, fc3 -- batched over T, lane-dense padded output
        hid = jnp.maximum(
            jnp.dot(ys1_ref[...], seg(slab_ref, "w2"),
                    preferred_element_type=jnp.float32) + seg(slab_ref, "b2"), 0.0)
        hid = hid[:, :FC2]                                           # (T, 64)
        out_ref[...] = jnp.dot(hid, seg(slab_ref, "w3"),
                               preferred_element_type=jnp.float32) + seg(slab_ref, "b3")

    return kernel


def _net_pallas(x, slab, hc0, offs):
    T = x.shape[0]
    kernel = _make_net_kernel(T, offs)
    vmem = pl.BlockSpec(memory_space=pltpu.MemorySpace.VMEM)
    out_pad, hcT = pl.pallas_call(
        kernel,
        out_shape=(
            jax.ShapeDtypeStruct((T, LANES), jnp.float32),
            jax.ShapeDtypeStruct((2 * NUM_LAYERS, HIDDEN), jnp.float32),
        ),
        in_specs=[vmem, vmem, vmem],
        out_specs=(vmem, vmem),
        scratch_shapes=[pltpu.VMEM((T, HIDDEN), jnp.float32),   # layer-0 outputs
                        pltpu.VMEM((T, HIDDEN), jnp.float32)],  # layer-1 outputs
    )(x, slab, hc0)
    return out_pad, hcT


# ------------------------------- Net wrapper -----------------------------------
def init_params(key, statesize, actionsize):
    def uniform(key, shape, fan_in):
        k = 1.0 / jnp.sqrt(jnp.float32(fan_in))
        return jax.random.uniform(key, shape, jnp.float32, -k, k)

    keys = jax.random.split(key, 14)
    # fc1: (hidden, statesize) -> transposed
    w1_t = uniform(keys[0], (statesize, HIDDEN), statesize)
    b1 = uniform(keys[1], (1, HIDDEN), statesize)
    # lstm: per layer W_ih (4H, H) / W_hh (4H, H) -> transposed
    wih_t = jnp.stack([uniform(keys[2 + l], (HIDDEN, 4 * HIDDEN), HIDDEN)
                       for l in range(NUM_LAYERS)])
    whh_t = jnp.stack([uniform(keys[4 + l], (HIDDEN, 4 * HIDDEN), HIDDEN)
                       for l in range(NUM_LAYERS)])
    b_ih = jnp.stack([uniform(keys[6 + l], (1, 4 * HIDDEN), HIDDEN)
                      for l in range(NUM_LAYERS)])
    b_hh = jnp.stack([uniform(keys[8 + l], (1, 4 * HIDDEN), HIDDEN)
                      for l in range(NUM_LAYERS)])
    b_lstm = b_ih + b_hh  # (L, 1, 4H)  (PyTorch adds b_ih + b_hh)
    # fc2: (64, hidden) -> transposed
    w2_t = uniform(keys[10], (HIDDEN, FC2), HIDDEN)
    b2 = uniform(keys[11], (1, FC2), HIDDEN)
    # fc3: (actionsize, 64) -> transposed
    w3_t = uniform(keys[12], (FC2, actionsize), FC2)
    b3 = uniform(keys[13], (1, actionsize), FC2)

    # Pre-scale the sigmoid gate columns (i, f, o) by 0.5 so the kernel only
    # needs a single tanh + fma per gate vreg (sigmoid(x) = 0.5*tanh(x/2)+0.5).
    lane = jnp.arange(4 * HIDDEN)
    gate_scale = jnp.where((lane >= 2 * HIDDEN) & (lane < 3 * HIDDEN),
                           1.0, 0.5).astype(jnp.float32)
    wih_s = wih_t * gate_scale[None, None, :]
    whh_s = whh_t * gate_scale[None, None, :]
    b_s = b_lstm * gate_scale[None, None, :]

    # Pack everything into one lane-dense (rows, 128) slab; segments 8-aligned.
    offs, total_rows = _slab_layout(statesize)
    parts = [
        _pad_to(w1_t, _round8(statesize)), _pad_to(b1, 8),
        _pad_to(wih_s[0], _round8(HIDDEN)), _pad_to(whh_s[0], _round8(HIDDEN)),
        _pad_to(b_s[0], 8),
        _pad_to(wih_s[1], _round8(HIDDEN)), _pad_to(whh_s[1], _round8(HIDDEN)),
        _pad_to(b_s[1], 8),
        _pad_to(w2_t, _round8(HIDDEN)), _pad_to(b2, 8),
        _pad_to(w3_t, _round8(FC2)), _pad_to(b3, 8),
    ]
    slab = jnp.concatenate(parts, axis=0)
    assert slab.shape == (total_rows, LANES)

    return dict(slab=slab,
                # unscaled copies kept only for the pure-JAX reference check
                w1_t=w1_t, b1=b1, wih_t=wih_t, whh_t=whh_t, b_lstm=b_lstm,
                w2_t=w2_t, b2=b2, w3_t=w3_t, b3=b3)


@jax.jit
def net_forward(params, x, hx, cx):
    # x: (T, statesize); hx/cx: (NUM_LAYERS, 1, HIDDEN)  (torch convention)
    T, statesize = x.shape
    A = params["b3"].shape[1]                 # static from shape
    offs, _ = _slab_layout(statesize)
    hc0 = jnp.concatenate([hx.reshape(NUM_LAYERS, HIDDEN),
                           cx.reshape(NUM_LAYERS, HIDDEN)], axis=0)   # (4, H)
    out_pad, hcT = _net_pallas(x, params["slab"], hc0, offs)
    action_prob = out_pad[:, :A].reshape(T, 1, A)
    new_h = (hcT[0:NUM_LAYERS].reshape(NUM_LAYERS, 1, HIDDEN),
             hcT[NUM_LAYERS:].reshape(NUM_LAYERS, 1, HIDDEN))
    return action_prob, new_h


# ------------------------------ pure-JAX reference ------------------------------
def reference_forward(params, x, hx, cx):
    p = params
    y = jnp.maximum(x @ p["w1_t"] + p["b1"], 0.0)
    T = y.shape[0]
    h = hx.reshape(NUM_LAYERS, HIDDEN)
    c = cx.reshape(NUM_LAYERS, HIDDEN)
    outs = []
    for t in range(T):
        x_in = y[t:t + 1]
        h_rows, c_rows = [], []
        for l in range(NUM_LAYERS):
            gates = x_in @ p["wih_t"][l] + h[l:l + 1] @ p["whh_t"][l] + p["b_lstm"][l]
            i_g = jax.nn.sigmoid(gates[:, :HIDDEN])
            f_g = jax.nn.sigmoid(gates[:, HIDDEN:2 * HIDDEN])
            g_g = jnp.tanh(gates[:, 2 * HIDDEN:3 * HIDDEN])
            o_g = jax.nn.sigmoid(gates[:, 3 * HIDDEN:])
            c_l = f_g * c[l:l + 1] + i_g * g_g
            h_l = o_g * jnp.tanh(c_l)
            h_rows.append(h_l)
            c_rows.append(c_l)
            x_in = h_l
        h = jnp.concatenate(h_rows, 0)
        c = jnp.concatenate(c_rows, 0)
        outs.append(x_in)
    ys = jnp.concatenate(outs, 0)
    hid = jnp.maximum(ys @ p["w2_t"] + p["b2"], 0.0)
    out = (hid @ p["w3_t"] + p["b3"]).reshape(T, 1, -1)
    return out, (h.reshape(NUM_LAYERS, 1, HIDDEN), c.reshape(NUM_LAYERS, 1, HIDDEN))


if __name__ == "__main__":
    statesize, actionsize, T = 16, 4, 8

    key = jax.random.PRNGKey(0)
    kp, kx, kh, kc = jax.random.split(key, 4)
    params = init_params(kp, statesize, actionsize)

    x = jax.random.normal(kx, (T, statesize), jnp.float32)
    hx = jax.random.normal(kh, (NUM_LAYERS, 1, HIDDEN), jnp.float32)
    cx = jax.random.normal(kc, (NUM_LAYERS, 1, HIDDEN), jnp.float32)

    action_prob, (new_hx, new_cx) = net_forward(params, x, hx, cx)
    jax.block_until_ready((action_prob, new_hx, new_cx))

    # sanity check against a pure-JAX reference
    ref_ap, (ref_hx, ref_cx) = reference_forward(params, x, hx, cx)
    assert action_prob.shape == (T, 1, actionsize)
    assert new_hx.shape == (NUM_LAYERS, 1, HIDDEN) and new_cx.shape == (NUM_LAYERS, 1, HIDDEN)
    assert jnp.allclose(action_prob, ref_ap, atol=1e-3, rtol=1e-3)
    assert jnp.allclose(new_hx, ref_hx, atol=1e-3, rtol=1e-3)
    assert jnp.allclose(new_cx, ref_cx, atol=1e-3, rtol=1e-3)

    print("KERNEL_OK")
</pallas_src>

<mosaic_0001>
module attributes {stable_mosaic.version = 11 : i64} {
  func.func @kernel(%arg0: memref<8x16xf32, #tpu.memory_space<vmem>>, %arg1: memref<280x128xf32, #tpu.memory_space<vmem>>, %arg2: memref<4x32xf32, #tpu.memory_space<vmem>>, %arg3: memref<8x128xf32, #tpu.memory_space<vmem>>, %arg4: memref<4x32xf32, #tpu.memory_space<vmem>>, %arg5: memref<8x32xf32, #tpu.memory_space<vmem>>, %arg6: memref<8x32xf32, #tpu.memory_space<vmem>>) attributes {dimension_semantics = [], scalar_prefetch = 0 : i64, scratch_operands = 2 : i64, tpu.core_type = #tpu.core_type<tc>} {
    %0 = tpu.iota {dimensions = array<i32: 1>} : vector<1x128xi32>
    %c64_i32 = arith.constant 64 : i32
    %1 = vector.broadcast %c64_i32 : i32 to vector<1x128xi32>
    %2 = arith.cmpi sge, %0, %1 : vector<1x128xi32>
    %c96_i32 = arith.constant 96 : i32
    %3 = vector.broadcast %c96_i32 : i32 to vector<1x128xi32>
    %4 = arith.cmpi slt, %0, %3 : vector<1x128xi32>
    %5 = arith.andi %2, %4 : vector<1x128xi1>
    %cst = arith.constant 1.000000e+00 : f32
    %cst_0 = arith.constant 5.000000e-01 : f32
    %6 = vector.broadcast %cst : f32 to vector<1x128xf32>
    %7 = vector.broadcast %cst_0 : f32 to vector<1x128xf32>
    %8 = arith.select %5, %6, %7 : vector<1x128xi1>, vector<1x128xf32>
    %cst_1 = arith.constant 0.000000e+00 : f32
    %cst_2 = arith.constant 5.000000e-01 : f32
    %9 = vector.broadcast %cst_1 : f32 to vector<1x128xf32>
    %10 = vector.broadcast %cst_2 : f32 to vector<1x128xf32>
    %11 = arith.select %5, %9, %10 : vector<1x128xi1>, vector<1x128xf32>
    %c0 = arith.constant 0 : index
    %c0_3 = arith.constant 0 : index
    %12 = vector.load %arg1[%c0, %c0_3] : memref<280x128xf32, #tpu.memory_space<vmem>>, vector<16x128xf32>
    %c16 = arith.constant 16 : index
    %c0_4 = arith.constant 0 : index
    %13 = vector.load %arg1[%c16, %c0_4] : memref<280x128xf32, #tpu.memory_space<vmem>>, vector<1x128xf32>
    %c0_5 = arith.constant 0 : index
    %c0_6 = arith.constant 0 : index
    %14 = vector.load %arg0[%c0_5, %c0_6] : memref<8x16xf32, #tpu.memory_space<vmem>>, vector<8x16xf32>
    %cst_7 = arith.constant dense<0.000000e+00> : vector<8x128xf32>
    %15 = tpu.matmul %14, %12, %cst_7 {dimension_numbers = #tpu.dot_dimension_numbers<[1], [0], [0], [1], [0, 0, 1, 1], [], []>} : vector<8x16xf32>, vector<16x128xf32>, vector<8x128xf32> -> vector<8x128xf32>
    %16 = vector.broadcast %13 : vector<1x128xf32> to vector<8x128xf32>
    %17 = arith.addf %15, %16 : vector<8x128xf32>
    %cst_8 = arith.constant 0.000000e+00 : f32
    %18 = vector.broadcast %cst_8 : f32 to vector<8x128xf32>
    %19 = arith.maximumf %17, %18 : vector<8x128xf32>
    %20 = vector.extract_strided_slice %19 {offsets = [0, 0], sizes = [8, 32], strides = [1, 1]} : vector<8x128xf32> to vector<8x32xf32>
    %c24 = arith.constant 24 : index
    %c0_9 = arith.constant 0 : index
    %21 = vector.load %arg1[%c24, %c0_9] : memref<280x128xf32, #tpu.memory_space<vmem>>, vector<32x128xf32>
    %cst_10 = arith.constant dense<0.000000e+00> : vector<8x128xf32>
    %22 = tpu.matmul %20, %21, %cst_10 {dimension_numbers = #tpu.dot_dimension_numbers<[1], [0], [0], [1], [0, 0, 1, 1], [], []>} : vector<8x32xf32>, vector<32x128xf32>, vector<8x128xf32> -> vector<8x128xf32>
    %c88 = arith.constant 88 : index
    %c0_11 = arith.constant 0 : index
    %23 = vector.load %arg1[%c88, %c0_11] : memref<280x128xf32, #tpu.memory_space<vmem>>, vector<1x128xf32>
    %24 = vector.broadcast %23 : vector<1x128xf32> to vector<8x128xf32>
    %25 = arith.addf %22, %24 : vector<8x128xf32>
    %c56 = arith.constant 56 : index
    %c0_12 = arith.constant 0 : index
    %26 = vector.load %arg1[%c56, %c0_12] : memref<280x128xf32, #tpu.memory_space<vmem>>, vector<32x128xf32>
    %c0_13 = arith.constant 0 : index
    %c0_14 = arith.constant 0 : index
    %27 = vector.load %arg2[%c0_13, %c0_14] : memref<4x32xf32, #tpu.memory_space<vmem>>, vector<1x32xf32>
    %c2 = arith.constant 2 : index
    %c0_15 = arith.constant 0 : index
    %28 = vector.load %arg2[%c2, %c0_15] : memref<4x32xf32, #tpu.memory_space<vmem>>, vector<1x32xf32>
    %29 = vector.extract_strided_slice %25 {offsets = [0, 0], sizes = [1, 128], strides = [1, 1]} : vector<8x128xf32> to vector<1x128xf32>
    %cst_16 = arith.constant dense<0.000000e+00> : vector<1x128xf32>
    %30 = tpu.matmul %27, %26, %cst_16 {dimension_numbers = #tpu.dot_dimension_numbers<[1], [0], [0], [1], [0, 0, 1, 1], [], []>} : vector<1x32xf32>, vector<32x128xf32>, vector<1x128xf32> -> vector<1x128xf32>
    %31 = arith.addf %29, %30 : vector<1x128xf32>
    %32 = math.tanh %31 : vector<1x128xf32>
    %33 = arith.mulf %32, %8 : vector<1x128xf32>
    %34 = arith.addf %33, %11 : vector<1x128xf32>
    %35 = vector.extract_strided_slice %34 {offsets = [0, 0], sizes = [1, 32], strides = [1, 1]} : vector<1x128xf32> to vector<1x32xf32>
    %36 = vector.extract_strided_slice %34 {offsets = [0, 32], sizes = [1, 32], strides = [1, 1]} : vector<1x128xf32> to vector<1x32xf32>
    %37 = vector.extract_strided_slice %34 {offsets = [0, 64], sizes = [1, 32], strides = [1, 1]} : vector<1x128xf32> to vector<1x32xf32>
    %38 = vector.extract_strided_slice %34 {offsets = [0, 96], sizes = [1, 32], strides = [1, 1]} : vector<1x128xf32> to vector<1x32xf32>
    %39 = arith.mulf %36, %28 : vector<1x32xf32>
    %40 = arith.mulf %35, %37 : vector<1x32xf32>
    %41 = arith.addf %39, %40 : vector<1x32xf32>
    %42 = math.tanh %41 : vector<1x32xf32>
    %43 = arith.mulf %38, %42 : vector<1x32xf32>
    %c0_17 = arith.constant 0 : index
    %c0_18 = arith.constant 0 : index
    %44 = vector.load %arg5[%c0_17, %c0_18] : memref<8x32xf32, #tpu.memory_space<vmem>>, vector<1x32xf32>
    tpu.vector_store %arg5[%c0_17, %c0_18], %43 {strides = array<i32>} : memref<8x32xf32, #tpu.memory_space<vmem>>, vector<1x32xf32>,
    %45 = vector.extract_strided_slice %25 {offsets = [1, 0], sizes = [1, 128], strides = [1, 1]} : vector<8x128xf32> to vector<1x128xf32>
    %cst_19 = arith.constant dense<0.000000e+00> : vector<1x128xf32>
    %46 = tpu.matmul %43, %26, %cst_19 {dimension_numbers = #tpu.dot_dimension_numbers<[1], [0], [0], [1], [0, 0, 1, 1], [], []>} : vector<1x32xf32>, vector<32x128xf32>, vector<1x128xf32> -> vector<1x128xf32>
    %47 = arith.addf %45, %46 : vector<1x128xf32>
    %48 = math.tanh %47 : vector<1x128xf32>
    %49 = arith.mulf %48, %8 : vector<1x128xf32>
    %50 = arith.addf %49, %11 : vector<1x128xf32>
    %51 = vector.extract_strided_slice %50 {offsets = [0, 0], sizes = [1, 32], strides = [1, 1]} : vector<1x128xf32> to vector<1x32xf32>
    %52 = vector.extract_strided_slice %50 {offsets = [0, 32], sizes = [1, 32], strides = [1, 1]} : vector<1x128xf32> to vector<1x32xf32>
    %53 = vector.extract_strided_slice %50 {offsets = [0, 64], sizes = [1, 32], strides = [1, 1]} : vector<1x128xf32> to vector<1x32xf32>
    %54 = vector.extract_strided_slice %50 {offsets = [0, 96], sizes = [1, 32], strides = [1, 1]} : vector<1x128xf32> to vector<1x32xf32>
    %55 = arith.mulf %52, %41 : vector<1x32xf32>
    %56 = arith.mulf %51, %53 : vector<1x32xf32>
    %57 = arith.addf %55, %56 : vector<1x32xf32>
    %58 = math.tanh %57 : vector<1x32xf32>
    %59 = arith.mulf %54, %58 : vector<1x32xf32>
    %c1 = arith.constant 1 : index
    %c0_20 = arith.constant 0 : index
    %60 = vector.load %arg5[%c1, %c0_20] : memref<8x32xf32, #tpu.memory_space<vmem>>, vector<1x32xf32>
    tpu.vector_store %arg5[%c1, %c0_20], %59 {strides = array<i32>} : memref<8x32xf32, #tpu.memory_space<vmem>>, vector<1x32xf32>,
    %61 = vector.extract_strided_slice %25 {offsets = [2, 0], sizes = [1, 128], strides = [1, 1]} : vector<8x128xf32> to vector<1x128xf32>
    %cst_21 = arith.constant dense<0.000000e+00> : vector<1x128xf32>
    %62 = tpu.matmul %59, %26, %cst_21 {dimension_numbers = #tpu.dot_dimension_numbers<[1], [0], [0], [1], [0, 0, 1, 1], [], []>} : vector<1x32xf32>, vector<32x128xf32>, vector<1x128xf32> -> vector<1x128xf32>
    %63 = arith.addf %61, %62 : vector<1x128xf32>
    %64 = math.tanh %63 : vector<1x128xf32>
    %65 = arith.mulf %64, %8 : vector<1x128xf32>
    %66 = arith.addf %65, %11 : vector<1x128xf32>
    %67 = vector.extract_strided_slice %66 {offsets = [0, 0], sizes = [1, 32], strides = [1, 1]} : vector<1x128xf32> to vector<1x32xf32>
    %68 = vector.extract_strided_slice %66 {offsets = [0, 32], sizes = [1, 32], strides = [1, 1]} : vector<1x128xf32> to vector<1x32xf32>
    %69 = vector.extract_strided_slice %66 {offsets = [0, 64], sizes = [1, 32], strides = [1, 1]} : vector<1x128xf32> to vector<1x32xf32>
    %70 = vector.extract_strided_slice %66 {offsets = [0, 96], sizes = [1, 32], strides = [1, 1]} : vector<1x128xf32> to vector<1x32xf32>
    %71 = arith.mulf %68, %57 : vector<1x32xf32>
    %72 = arith.mulf %67, %69 : vector<1x32xf32>
    %73 = arith.addf %71, %72 : vector<1x32xf32>
    %74 = math.tanh %73 : vector<1x32xf32>
    %75 = arith.mulf %70, %74 : vector<1x32xf32>
    %c2_22 = arith.constant 2 : index
    %c0_23 = arith.constant 0 : index
    %76 = vector.load %arg5[%c2_22, %c0_23] : memref<8x32xf32, #tpu.memory_space<vmem>>, vector<1x32xf32>
    tpu.vector_store %arg5[%c2_22, %c0_23], %75 {strides = array<i32>} : memref<8x32xf32, #tpu.memory_space<vmem>>, vector<1x32xf32>,
    %77 = vector.extract_strided_slice %25 {offsets = [3, 0], sizes = [1, 128], strides = [1, 1]} : vector<8x128xf32> to vector<1x128xf32>
    %cst_24 = arith.constant dense<0.000000e+00> : vector<1x128xf32>
    %78 = tpu.matmul %75, %26, %cst_24 {dimension_numbers = #tpu.dot_dimension_numbers<[1], [0], [0], [1], [0, 0, 1, 1], [], []>} : vector<1x32xf32>, vector<32x128xf32>, vector<1x128xf32> -> vector<1x128xf32>
    %79 = arith.addf %77, %78 : vector<1x128xf32>
    %80 = math.tanh %79 : vector<1x128xf32>
    %81 = arith.mulf %80, %8 : vector<1x128xf32>
    %82 = arith.addf %81, %11 : vector<1x128xf32>
    %83 = vector.extract_strided_slice %82 {offsets = [0, 0], sizes = [1, 32], strides = [1, 1]} : vector<1x128xf32> to vector<1x32xf32>
    %84 = vector.extract_strided_slice %82 {offsets = [0, 32], sizes = [1, 32], strides = [1, 1]} : vector<1x128xf32> to vector<1x32xf32>
    %85 = vector.extract_strided_slice %82 {offsets = [0, 64], sizes = [1, 32], strides = [1, 1]} : vector<1x128xf32> to vector<1x32xf32>
    %86 = vector.extract_strided_slice %82 {offsets = [0, 96], sizes = [1, 32], strides = [1, 1]} : vector<1x128xf32> to vector<1x32xf32>
    %87 = arith.mulf %84, %73 : vector<1x32xf32>
    %88 = arith.mulf %83, %85 : vector<1x32xf32>
    %89 = arith.addf %87, %88 : vector<1x32xf32>
    %90 = math.tanh %89 : vector<1x32xf32>
    %91 = arith.mulf %86, %90 : vector<1x32xf32>
    %c3 = arith.constant 3 : index
    %c0_25 = arith.constant 0 : index
    %92 = vector.load %arg5[%c3, %c0_25] : memref<8x32xf32, #tpu.memory_space<vmem>>, vector<1x32xf32>
    tpu.vector_store %arg5[%c3, %c0_25], %91 {strides = array<i32>} : memref<8x32xf32, #tpu.memory_space<vmem>>, vector<1x32xf32>,
    %93 = vector.extract_strided_slice %25 {offsets = [4, 0], sizes = [1, 128], strides = [1, 1]} : vector<8x128xf32> to vector<1x128xf32>
    %cst_26 = arith.constant dense<0.000000e+00> : vector<1x128xf32>
    %94 = tpu.matmul %91, %26, %cst_26 {dimension_numbers = #tpu.dot_dimension_numbers<[1], [0], [0], [1], [0, 0, 1, 1], [], []>} : vector<1x32xf32>, vector<32x128xf32>, vector<1x128xf32> -> vector<1x128xf32>
    %95 = arith.addf %93, %94 : vector<1x128xf32>
    %96 = math.tanh %95 : vector<1x128xf32>
    %97 = arith.mulf %96, %8 : vector<1x128xf32>
    %98 = arith.addf %97, %11 : vector<1x128xf32>
    %99 = vector.extract_strided_slice %98 {offsets = [0, 0], sizes = [1, 32], strides = [1, 1]} : vector<1x128xf32> to vector<1x32xf32>
    %100 = vector.extract_strided_slice %98 {offsets = [0, 32], sizes = [1, 32], strides = [1, 1]} : vector<1x128xf32> to vector<1x32xf32>
    %101 = vector.extract_strided_slice %98 {offsets = [0, 64], sizes = [1, 32], strides = [1, 1]} : vector<1x128xf32> to vector<1x32xf32>
    %102 = vector.extract_strided_slice %98 {offsets = [0, 96], sizes = [1, 32], strides = [1, 1]} : vector<1x128xf32> to vector<1x32xf32>
    %103 = arith.mulf %100, %89 : vector<1x32xf32>
    %104 = arith.mulf %99, %101 : vector<1x32xf32>
    %105 = arith.addf %103, %104 : vector<1x32xf32>
    %106 = math.tanh %105 : vector<1x32xf32>
    %107 = arith.mulf %102, %106 : vector<1x32xf32>
    %c4 = arith.constant 4 : index
    %c0_27 = arith.constant 0 : index
    %108 = vector.load %arg5[%c4, %c0_27] : memref<8x32xf32, #tpu.memory_space<vmem>>, vector<1x32xf32>
    tpu.vector_store %arg5[%c4, %c0_27], %107 {strides = array<i32>} : memref<8x32xf32, #tpu.memory_space<vmem>>, vector<1x32xf32>,
    %109 = vector.extract_strided_slice %25 {offsets = [5, 0], sizes = [1, 128], strides = [1, 1]} : vector<8x128xf32> to vector<1x128xf32>
    %cst_28 = arith.constant dense<0.000000e+00> : vector<1x128xf32>
    %110 = tpu.matmul %107, %26, %cst_28 {dimension_numbers = #tpu.dot_dimension_numbers<[1], [0], [0], [1], [0, 0, 1, 1], [], []>} : vector<1x32xf32>, vector<32x128xf32>, vector<1x128xf32> -> vector<1x128xf32>
    %111 = arith.addf %109, %110 : vector<1x128xf32>
    %112 = math.tanh %111 : vector<1x128xf32>
    %113 = arith.mulf %112, %8 : vector<1x128xf32>
    %114 = arith.addf %113, %11 : vector<1x128xf32>
    %115 = vector.extract_strided_slice %114 {offsets = [0, 0], sizes = [1, 32], strides = [1, 1]} : vector<1x128xf32> to vector<1x32xf32>
    %116 = vector.extract_strided_slice %114 {offsets = [0, 32], sizes = [1, 32], strides = [1, 1]} : vector<1x128xf32> to vector<1x32xf32>
    %117 = vector.extract_strided_slice %114 {offsets = [0, 64], sizes = [1, 32], strides = [1, 1]} : vector<1x128xf32> to vector<1x32xf32>
    %118 = vector.extract_strided_slice %114 {offsets = [0, 96], sizes = [1, 32], strides = [1, 1]} : vector<1x128xf32> to vector<1x32xf32>
    %119 = arith.mulf %116, %105 : vector<1x32xf32>
    %120 = arith.mulf %115, %117 : vector<1x32xf32>
    %121 = arith.addf %119, %120 : vector<1x32xf32>
    %122 = math.tanh %121 : vector<1x32xf32>
    %123 = arith.mulf %118, %122 : vector<1x32xf32>
    %c5 = arith.constant 5 : index
    %c0_29 = arith.constant 0 : index
    %124 = vector.load %arg5[%c5, %c0_29] : memref<8x32xf32, #tpu.memory_space<vmem>>, vector<1x32xf32>
    tpu.vector_store %arg5[%c5, %c0_29], %123 {strides = array<i32>} : memref<8x32xf32, #tpu.memory_space<vmem>>, vector<1x32xf32>,
    %125 = vector.extract_strided_slice %25 {offsets = [6, 0], sizes = [1, 128], strides = [1, 1]} : vector<8x128xf32> to vector<1x128xf32>
    %cst_30 = arith.constant dense<0.000000e+00> : vector<1x128xf32>
    %126 = tpu.matmul %123, %26, %cst_30 {dimension_numbers = #tpu.dot_dimension_numbers<[1], [0], [0], [1], [0, 0, 1, 1], [], []>} : vector<1x32xf32>, vector<32x128xf32>, vector<1x128xf32> -> vector<1x128xf32>
    %127 = arith.addf %125, %126 : vector<1x128xf32>
    %128 = math.tanh %127 : vector<1x128xf32>
    %129 = arith.mulf %128, %8 : vector<1x128xf32>
    %130 = arith.addf %129, %11 : vector<1x128xf32>
    %131 = vector.extract_strided_slice %130 {offsets = [0, 0], sizes = [1, 32], strides = [1, 1]} : vector<1x128xf32> to vector<1x32xf32>
    %132 = vector.extract_strided_slice %130 {offsets = [0, 32], sizes = [1, 32], strides = [1, 1]} : vector<1x128xf32> to vector<1x32xf32>
    %133 = vector.extract_strided_slice %130 {offsets = [0, 64], sizes = [1, 32], strides = [1, 1]} : vector<1x128xf32> to vector<1x32xf32>
    %134 = vector.extract_strided_slice %130 {offsets = [0, 96], sizes = [1, 32], strides = [1, 1]} : vector<1x128xf32> to vector<1x32xf32>
    %135 = arith.mulf %132, %121 : vector<1x32xf32>
    %136 = arith.mulf %131, %133 : vector<1x32xf32>
    %137 = arith.addf %135, %136 : vector<1x32xf32>
    %138 = math.tanh %137 : vector<1x32xf32>
    %139 = arith.mulf %134, %138 : vector<1x32xf32>
    %c6 = arith.constant 6 : index
    %c0_31 = arith.constant 0 : index
    %140 = vector.load %arg5[%c6, %c0_31] : memref<8x32xf32, #tpu.memory_space<vmem>>, vector<1x32xf32>
    tpu.vector_store %arg5[%c6, %c0_31], %139 {strides = array<i32>} : memref<8x32xf32, #tpu.memory_space<vmem>>, vector<1x32xf32>,
    %141 = vector.extract_strided_slice %25 {offsets = [7, 0], sizes = [1, 128], strides = [1, 1]} : vector<8x128xf32> to vector<1x128xf32>
    %cst_32 = arith.constant dense<0.000000e+00> : vector<1x128xf32>
    %142 = tpu.matmul %139, %26, %cst_32 {dimension_numbers = #tpu.dot_dimension_numbers<[1], [0], [0], [1], [0, 0, 1, 1], [], []>} : vector<1x32xf32>, vector<32x128xf32>, vector<1x128xf32> -> vector<1x128xf32>
    %143 = arith.addf %141, %142 : vector<1x128xf32>
    %144 = math.tanh %143 : vector<1x128xf32>
    %145 = arith.mulf %144, %8 : vector<1x128xf32>
    %146 = arith.addf %145, %11 : vector<1x128xf32>
    %147 = vector.extract_strided_slice %146 {offsets = [0, 0], sizes = [1, 32], strides = [1, 1]} : vector<1x128xf32> to vector<1x32xf32>
    %148 = vector.extract_strided_slice %146 {offsets = [0, 32], sizes = [1, 32], strides = [1, 1]} : vector<1x128xf32> to vector<1x32xf32>
    %149 = vector.extract_strided_slice %146 {offsets = [0, 64], sizes = [1, 32], strides = [1, 1]} : vector<1x128xf32> to vector<1x32xf32>
    %150 = vector.extract_strided_slice %146 {offsets = [0, 96], sizes = [1, 32], strides = [1, 1]} : vector<1x128xf32> to vector<1x32xf32>
    %151 = arith.mulf %148, %137 : vector<1x32xf32>
    %152 = arith.mulf %147, %149 : vector<1x32xf32>
    %153 = arith.addf %151, %152 : vector<1x32xf32>
    %154 = math.tanh %153 : vector<1x32xf32>
    %155 = arith.mulf %150, %154 : vector<1x32xf32>
    %c7 = arith.constant 7 : index
    %c0_33 = arith.constant 0 : index
    %156 = vector.load %arg5[%c7, %c0_33] : memref<8x32xf32, #tpu.memory_space<vmem>>, vector<1x32xf32>
    tpu.vector_store %arg5[%c7, %c0_33], %155 {strides = array<i32>} : memref<8x32xf32, #tpu.memory_space<vmem>>, vector<1x32xf32>,
    %c0_34 = arith.constant 0 : index
    %c0_35 = arith.constant 0 : index
    %157 = vector.load %arg4[%c0_34, %c0_35] : memref<4x32xf32, #tpu.memory_space<vmem>>, vector<1x32xf32>
    tpu.vector_store %arg4[%c0_34, %c0_35], %155 {strides = array<i32>} : memref<4x32xf32, #tpu.memory_space<vmem>>, vector<1x32xf32>,
    %c2_36 = arith.constant 2 : index
    %c0_37 = arith.constant 0 : index
    %158 = vector.load %arg4[%c2_36, %c0_37] : memref<4x32xf32, #tpu.memory_space<vmem>>, vector<1x32xf32>
    tpu.vector_store %arg4[%c2_36, %c0_37], %153 {strides = array<i32>} : memref<4x32xf32, #tpu.memory_space<vmem>>, vector<1x32xf32>,
    %c0_38 = arith.constant 0 : index
    %c0_39 = arith.constant 0 : index
    %159 = vector.load %arg5[%c0_38, %c0_39] : memref<8x32xf32, #tpu.memory_space<vmem>>, vector<8x32xf32>
    %c96 = arith.constant 96 : index
    %c0_40 = arith.constant 0 : index
    %160 = vector.load %arg1[%c96, %c0_40] : memref<280x128xf32, #tpu.memory_space<vmem>>, vector<32x128xf32>
    %cst_41 = arith.constant dense<0.000000e+00> : vector<8x128xf32>
    %161 = tpu.matmul %159, %160, %cst_41 {dimension_numbers = #tpu.dot_dimension_numbers<[1], [0], [0], [1], [0, 0, 1, 1], [], []>} : vector<8x32xf32>, vector<32x128xf32>, vector<8x128xf32> -> vector<8x128xf32>
    %c160 = arith.constant 160 : index
    %c0_42 = arith.constant 0 : index
    %162 = vector.load %arg1[%c160, %c0_42] : memref<280x128xf32, #tpu.memory_space<vmem>>, vector<1x128xf32>
    %163 = vector.broadcast %162 : vector<1x128xf32> to vector<8x128xf32>
    %164 = arith.addf %161, %163 : vector<8x128xf32>
    %c128 = arith.constant 128 : index
    %c0_43 = arith.constant 0 : index
    %165 = vector.load %arg1[%c128, %c0_43] : memref<280x128xf32, #tpu.memory_space<vmem>>, vector<32x128xf32>
    %c1_44 = arith.constant 1 : index
    %c0_45 = arith.constant 0 : index
    %166 = vector.load %arg2[%c1_44, %c0_45] : memref<4x32xf32, #tpu.memory_space<vmem>>, vector<1x32xf32>
    %c3_46 = arith.constant 3 : index
    %c0_47 = arith.constant 0 : index
    %167 = vector.load %arg2[%c3_46, %c0_47] : memref<4x32xf32, #tpu.memory_space<vmem>>, vector<1x32xf32>
    %168 = vector.extract_strided_slice %164 {offsets = [0, 0], sizes = [1, 128], strides = [1, 1]} : vector<8x128xf32> to vector<1x128xf32>
    %cst_48 = arith.constant dense<0.000000e+00> : vector<1x128xf32>
    %169 = tpu.matmul %166, %165, %cst_48 {dimension_numbers = #tpu.dot_dimension_numbers<[1], [0], [0], [1], [0, 0, 1, 1], [], []>} : vector<1x32xf32>, vector<32x128xf32>, vector<1x128xf32> -> vector<1x128xf32>
    %170 = arith.addf %168, %169 : vector<1x128xf32>
    %171 = math.tanh %170 : vector<1x128xf32>
    %172 = arith.mulf %171, %8 : vector<1x128xf32>
    %173 = arith.addf %172, %11 : vector<1x128xf32>
    %174 = vector.extract_strided_slice %173 {offsets = [0, 0], sizes = [1, 32], strides = [1, 1]} : vector<1x128xf32> to vector<1x32xf32>
    %175 = vector.extract_strided_slice %173 {offsets = [0, 32], sizes = [1, 32], strides = [1, 1]} : vector<1x128xf32> to vector<1x32xf32>
    %176 = vector.extract_strided_slice %173 {offsets = [0, 64], sizes = [1, 32], strides = [1, 1]} : vector<1x128xf32> to vector<1x32xf32>
    %177 = vector.extract_strided_slice %173 {offsets = [0, 96], sizes = [1, 32], strides = [1, 1]} : vector<1x128xf32> to vector<1x32xf32>
    %178 = arith.mulf %175, %167 : vector<1x32xf32>
    %179 = arith.mulf %174, %176 : vector<1x32xf32>
    %180 = arith.addf %178, %179 : vector<1x32xf32>
    %181 = math.tanh %180 : vector<1x32xf32>
    %182 = arith.mulf %177, %181 : vector<1x32xf32>
    %c0_49 = arith.constant 0 : index
    %c0_50 = arith.constant 0 : index
    %183 = vector.load %arg6[%c0_49, %c0_50] : memref<8x32xf32, #tpu.memory_space<vmem>>, vector<1x32xf32>
    tpu.vector_store %arg6[%c0_49, %c0_50], %182 {strides = array<i32>} : memref<8x32xf32, #tpu.memory_space<vmem>>, vector<1x32xf32>,
    %184 = vector.extract_strided_slice %164 {offsets = [1, 0], sizes = [1, 128], strides = [1, 1]} : vector<8x128xf32> to vector<1x128xf32>
    %cst_51 = arith.constant dense<0.000000e+00> : vector<1x128xf32>
    %185 = tpu.matmul %182, %165, %cst_51 {dimension_numbers = #tpu.dot_dimension_numbers<[1], [0], [0], [1], [0, 0, 1, 1], [], []>} : vector<1x32xf32>, vector<32x128xf32>, vector<1x128xf32> -> vector<1x128xf32>
    %186 = arith.addf %184, %185 : vector<1x128xf32>
    %187 = math.tanh %186 : vector<1x128xf32>
    %188 = arith.mulf %187, %8 : vector<1x128xf32>
    %189 = arith.addf %188, %11 : vector<1x128xf32>
    %190 = vector.extract_strided_slice %189 {offsets = [0, 0], sizes = [1, 32], strides = [1, 1]} : vector<1x128xf32> to vector<1x32xf32>
    %191 = vector.extract_strided_slice %189 {offsets = [0, 32], sizes = [1, 32], strides = [1, 1]} : vector<1x128xf32> to vector<1x32xf32>
    %192 = vector.extract_strided_slice %189 {offsets = [0, 64], sizes = [1, 32], strides = [1, 1]} : vector<1x128xf32> to vector<1x32xf32>
    %193 = vector.extract_strided_slice %189 {offsets = [0, 96], sizes = [1, 32], strides = [1, 1]} : vector<1x128xf32> to vector<1x32xf32>
    %194 = arith.mulf %191, %180 : vector<1x32xf32>
    %195 = arith.mulf %190, %192 : vector<1x32xf32>
    %196 = arith.addf %194, %195 : vector<1x32xf32>
    %197 = math.tanh %196 : vector<1x32xf32>
    %198 = arith.mulf %193, %197 : vector<1x32xf32>
    %c1_52 = arith.constant 1 : index
    %c0_53 = arith.constant 0 : index
    %199 = vector.load %arg6[%c1_52, %c0_53] : memref<8x32xf32, #tpu.memory_space<vmem>>, vector<1x32xf32>
    tpu.vector_store %arg6[%c1_52, %c0_53], %198 {strides = array<i32>} : memref<8x32xf32, #tpu.memory_space<vmem>>, vector<1x32xf32>,
    %200 = vector.extract_strided_slice %164 {offsets = [2, 0], sizes = [1, 128], strides = [1, 1]} : vector<8x128xf32> to vector<1x128xf32>
    %cst_54 = arith.constant dense<0.000000e+00> : vector<1x128xf32>
    %201 = tpu.matmul %198, %165, %cst_54 {dimension_numbers = #tpu.dot_dimension_numbers<[1], [0], [0], [1], [0, 0, 1, 1], [], []>} : vector<1x32xf32>, vector<32x128xf32>, vector<1x128xf32> -> vector<1x128xf32>
    %202 = arith.addf %200, %201 : vector<1x128xf32>
    %203 = math.tanh %202 : vector<1x128xf32>
    %204 = arith.mulf %203, %8 : vector<1x128xf32>
    %205 = arith.addf %204, %11 : vector<1x128xf32>
    %206 = vector.extract_strided_slice %205 {offsets = [0, 0], sizes = [1, 32], strides = [1, 1]} : vector<1x128xf32> to vector<1x32xf32>
    %207 = vector.extract_strided_slice %205 {offsets = [0, 32], sizes = [1, 32], strides = [1, 1]} : vector<1x128xf32> to vector<1x32xf32>
    %208 = vector.extract_strided_slice %205 {offsets = [0, 64], sizes = [1, 32], strides = [1, 1]} : vector<1x128xf32> to vector<1x32xf32>
    %209 = vector.extract_strided_slice %205 {offsets = [0, 96], sizes = [1, 32], strides = [1, 1]} : vector<1x128xf32> to vector<1x32xf32>
    %210 = arith.mulf %207, %196 : vector<1x32xf32>
    %211 = arith.mulf %206, %208 : vector<1x32xf32>
    %212 = arith.addf %210, %211 : vector<1x32xf32>
    %213 = math.tanh %212 : vector<1x32xf32>
    %214 = arith.mulf %209, %213 : vector<1x32xf32>
    %c2_55 = arith.constant 2 : index
    %c0_56 = arith.constant 0 : index
    %215 = vector.load %arg6[%c2_55, %c0_56] : memref<8x32xf32, #tpu.memory_space<vmem>>, vector<1x32xf32>
    tpu.vector_store %arg6[%c2_55, %c0_56], %214 {strides = array<i32>} : memref<8x32xf32, #tpu.memory_space<vmem>>, vector<1x32xf32>,
    %216 = vector.extract_strided_slice %164 {offsets = [3, 0], sizes = [1, 128], strides = [1, 1]} : vector<8x128xf32> to vector<1x128xf32>
    %cst_57 = arith.constant dense<0.000000e+00> : vector<1x128xf32>
    %217 = tpu.matmul %214, %165, %cst_57 {dimension_numbers = #tpu.dot_dimension_numbers<[1], [0], [0], [1], [0, 0, 1, 1], [], []>} : vector<1x32xf32>, vector<32x128xf32>, vector<1x128xf32> -> vector<1x128xf32>
    %218 = arith.addf %216, %217 : vector<1x128xf32>
    %219 = math.tanh %218 : vector<1x128xf32>
    %220 = arith.mulf %219, %8 : vector<1x128xf32>
    %221 = arith.addf %220, %11 : vector<1x128xf32>
    %222 = vector.extract_strided_slice %221 {offsets = [0, 0], sizes = [1, 32], strides = [1, 1]} : vector<1x128xf32> to vector<1x32xf32>
    %223 = vector.extract_strided_slice %221 {offsets = [0, 32], sizes = [1, 32], strides = [1, 1]} : vector<1x128xf32> to vector<1x32xf32>
    %224 = vector.extract_strided_slice %221 {offsets = [0, 64], sizes = [1, 32], strides = [1, 1]} : vector<1x128xf32> to vector<1x32xf32>
    %225 = vector.extract_strided_slice %221 {offsets = [0, 96], sizes = [1, 32], strides = [1, 1]} : vector<1x128xf32> to vector<1x32xf32>
    %226 = arith.mulf %223, %212 : vector<1x32xf32>
    %227 = arith.mulf %222, %224 : vector<1x32xf32>
    %228 = arith.addf %226, %227 : vector<1x32xf32>
    %229 = math.tanh %228 : vector<1x32xf32>
    %230 = arith.mulf %225, %229 : vector<1x32xf32>
    %c3_58 = arith.constant 3 : index
    %c0_59 = arith.constant 0 : index
    %231 = vector.load %arg6[%c3_58, %c0_59] : memref<8x32xf32, #tpu.memory_space<vmem>>, vector<1x32xf32>
    tpu.vector_store %arg6[%c3_58, %c0_59], %230 {strides = array<i32>} : memref<8x32xf32, #tpu.memory_space<vmem>>, vector<1x32xf32>,
    %232 = vector.extract_strided_slice %164 {offsets = [4, 0], sizes = [1, 128], strides = [1, 1]} : vector<8x128xf32> to vector<1x128xf32>
    %cst_60 = arith.constant dense<0.000000e+00> : vector<1x128xf32>
    %233 = tpu.matmul %230, %165, %cst_60 {dimension_numbers = #tpu.dot_dimension_numbers<[1], [0], [0], [1], [0, 0, 1, 1], [], []>} : vector<1x32xf32>, vector<32x128xf32>, vector<1x128xf32> -> vector<1x128xf32>
    %234 = arith.addf %232, %233 : vector<1x128xf32>
    %235 = math.tanh %234 : vector<1x128xf32>
    %236 = arith.mulf %235, %8 : vector<1x128xf32>
    %237 = arith.addf %236, %11 : vector<1x128xf32>
    %238 = vector.extract_strided_slice %237 {offsets = [0, 0], sizes = [1, 32], strides = [1, 1]} : vector<1x128xf32> to vector<1x32xf32>
    %239 = vector.extract_strided_slice %237 {offsets = [0, 32], sizes = [1, 32], strides = [1, 1]} : vector<1x128xf32> to vector<1x32xf32>
    %240 = vector.extract_strided_slice %237 {offsets = [0, 64], sizes = [1, 32], strides = [1, 1]} : vector<1x128xf32> to vector<1x32xf32>
    %241 = vector.extract_strided_slice %237 {offsets = [0, 96], sizes = [1, 32], strides = [1, 1]} : vector<1x128xf32> to vector<1x32xf32>
    %242 = arith.mulf %239, %228 : vector<1x32xf32>
    %243 = arith.mulf %238, %240 : vector<1x32xf32>
    %244 = arith.addf %242, %243 : vector<1x32xf32>
    %245 = math.tanh %244 : vector<1x32xf32>
    %246 = arith.mulf %241, %245 : vector<1x32xf32>
    %c4_61 = arith.constant 4 : index
    %c0_62 = arith.constant 0 : index
    %247 = vector.load %arg6[%c4_61, %c0_62] : memref<8x32xf32, #tpu.memory_space<vmem>>, vector<1x32xf32>
    tpu.vector_store %arg6[%c4_61, %c0_62], %246 {strides = array<i32>} : memref<8x32xf32, #tpu.memory_space<vmem>>, vector<1x32xf32>,
    %248 = vector.extract_strided_slice %164 {offsets = [5, 0], sizes = [1, 128], strides = [1, 1]} : vector<8x128xf32> to vector<1x128xf32>
    %cst_63 = arith.constant dense<0.000000e+00> : vector<1x128xf32>
    %249 = tpu.matmul %246, %165, %cst_63 {dimension_numbers = #tpu.dot_dimension_numbers<[1], [0], [0], [1], [0, 0, 1, 1], [], []>} : vector<1x32xf32>, vector<32x128xf32>, vector<1x128xf32> -> vector<1x128xf32>
    %250 = arith.addf %248, %249 : vector<1x128xf32>
    %251 = math.tanh %250 : vector<1x128xf32>
    %252 = arith.mulf %251, %8 : vector<1x128xf32>
    %253 = arith.addf %252, %11 : vector<1x128xf32>
    %254 = vector.extract_strided_slice %253 {offsets = [0, 0], sizes = [1, 32], strides = [1, 1]} : vector<1x128xf32> to vector<1x32xf32>
    %255 = vector.extract_strided_slice %253 {offsets = [0, 32], sizes = [1, 32], strides = [1, 1]} : vector<1x128xf32> to vector<1x32xf32>
    %256 = vector.extract_strided_slice %253 {offsets = [0, 64], sizes = [1, 32], strides = [1, 1]} : vector<1x128xf32> to vector<1x32xf32>
    %257 = vector.extract_strided_slice %253 {offsets = [0, 96], sizes = [1, 32], strides = [1, 1]} : vector<1x128xf32> to vector<1x32xf32>
    %258 = arith.mulf %255, %244 : vector<1x32xf32>
    %259 = arith.mulf %254, %256 : vector<1x32xf32>
    %260 = arith.addf %258, %259 : vector<1x32xf32>
    %261 = math.tanh %260 : vector<1x32xf32>
    %262 = arith.mulf %257, %261 : vector<1x32xf32>
    %c5_64 = arith.constant 5 : index
    %c0_65 = arith.constant 0 : index
    %263 = vector.load %arg6[%c5_64, %c0_65] : memref<8x32xf32, #tpu.memory_space<vmem>>, vector<1x32xf32>
    tpu.vector_store %arg6[%c5_64, %c0_65], %262 {strides = array<i32>} : memref<8x32xf32, #tpu.memory_space<vmem>>, vector<1x32xf32>,
    %264 = vector.extract_strided_slice %164 {offsets = [6, 0], sizes = [1, 128], strides = [1, 1]} : vector<8x128xf32> to vector<1x128xf32>
    %cst_66 = arith.constant dense<0.000000e+00> : vector<1x128xf32>
    %265 = tpu.matmul %262, %165, %cst_66 {dimension_numbers = #tpu.dot_dimension_numbers<[1], [0], [0], [1], [0, 0, 1, 1], [], []>} : vector<1x32xf32>, vector<32x128xf32>, vector<1x128xf32> -> vector<1x128xf32>
    %266 = arith.addf %264, %265 : vector<1x128xf32>
    %267 = math.tanh %266 : vector<1x128xf32>
    %268 = arith.mulf %267, %8 : vector<1x128xf32>
    %269 = arith.addf %268, %11 : vector<1x128xf32>
    %270 = vector.extract_strided_slice %269 {offsets = [0, 0], sizes = [1, 32], strides = [1, 1]} : vector<1x128xf32> to vector<1x32xf32>
    %271 = vector.extract_strided_slice %269 {offsets = [0, 32], sizes = [1, 32], strides = [1, 1]} : vector<1x128xf32> to vector<1x32xf32>
    %272 = vector.extract_strided_slice %269 {offsets = [0, 64], sizes = [1, 32], strides = [1, 1]} : vector<1x128xf32> to vector<1x32xf32>
    %273 = vector.extract_strided_slice %269 {offsets = [0, 96], sizes = [1, 32], strides = [1, 1]} : vector<1x128xf32> to vector<1x32xf32>
    %274 = arith.mulf %271, %260 : vector<1x32xf32>
    %275 = arith.mulf %270, %272 : vector<1x32xf32>
    %276 = arith.addf %274, %275 : vector<1x32xf32>
    %277 = math.tanh %276 : vector<1x32xf32>
    %278 = arith.mulf %273, %277 : vector<1x32xf32>
    %c6_67 = arith.constant 6 : index
    %c0_68 = arith.constant 0 : index
    %279 = vector.load %arg6[%c6_67, %c0_68] : memref<8x32xf32, #tpu.memory_space<vmem>>, vector<1x32xf32>
    tpu.vector_store %arg6[%c6_67, %c0_68], %278 {strides = array<i32>} : memref<8x32xf32, #tpu.memory_space<vmem>>, vector<1x32xf32>,
    %280 = vector.extract_strided_slice %164 {offsets = [7, 0], sizes = [1, 128], strides = [1, 1]} : vector<8x128xf32> to vector<1x128xf32>
    %cst_69 = arith.constant dense<0.000000e+00> : vector<1x128xf32>
    %281 = tpu.matmul %278, %165, %cst_69 {dimension_numbers = #tpu.dot_dimension_numbers<[1], [0], [0], [1], [0, 0, 1, 1], [], []>} : vector<1x32xf32>, vector<32x128xf32>, vector<1x128xf32> -> vector<1x128xf32>
    %282 = arith.addf %280, %281 : vector<1x128xf32>
    %283 = math.tanh %282 : vector<1x128xf32>
    %284 = arith.mulf %283, %8 : vector<1x128xf32>
    %285 = arith.addf %284, %11 : vector<1x128xf32>
    %286 = vector.extract_strided_slice %285 {offsets = [0, 0], sizes = [1, 32], strides = [1, 1]} : vector<1x128xf32> to vector<1x32xf32>
    %287 = vector.extract_strided_slice %285 {offsets = [0, 32], sizes = [1, 32], strides = [1, 1]} : vector<1x128xf32> to vector<1x32xf32>
    %288 = vector.extract_strided_slice %285 {offsets = [0, 64], sizes = [1, 32], strides = [1, 1]} : vector<1x128xf32> to vector<1x32xf32>
    %289 = vector.extract_strided_slice %285 {offsets = [0, 96], sizes = [1, 32], strides = [1, 1]} : vector<1x128xf32> to vector<1x32xf32>
    %290 = arith.mulf %287, %276 : vector<1x32xf32>
    %291 = arith.mulf %286, %288 : vector<1x32xf32>
    %292 = arith.addf %290, %291 : vector<1x32xf32>
    %293 = math.tanh %292 : vector<1x32xf32>
    %294 = arith.mulf %289, %293 : vector<1x32xf32>
    %c7_70 = arith.constant 7 : index
    %c0_71 = arith.constant 0 : index
    %295 = vector.load %arg6[%c7_70, %c0_71] : memref<8x32xf32, #tpu.memory_space<vmem>>, vector<1x32xf32>
    tpu.vector_store %arg6[%c7_70, %c0_71], %294 {strides = array<i32>} : memref<8x32xf32, #tpu.memory_space<vmem>>, vector<1x32xf32>,
    %c1_72 = arith.constant 1 : index
    %c0_73 = arith.constant 0 : index
    %296 = vector.load %arg4[%c1_72, %c0_73] : memref<4x32xf32, #tpu.memory_space<vmem>>, vector<1x32xf32>
    tpu.vector_store %arg4[%c1_72, %c0_73], %294 {strides = array<i32>} : memref<4x32xf32, #tpu.memory_space<vmem>>, vector<1x32xf32>,
    %c3_74 = arith.constant 3 : index
    %c0_75 = arith.constant 0 : index
    %297 = vector.load %arg4[%c3_74, %c0_75] : memref<4x32xf32, #tpu.memory_space<vmem>>, vector<1x32xf32>
    tpu.vector_store %arg4[%c3_74, %c0_75], %292 {strides = array<i32>} : memref<4x32xf32, #tpu.memory_space<vmem>>, vector<1x32xf32>,
    %c0_76 = arith.constant 0 : index
    %c0_77 = arith.constant 0 : index
    %298 = vector.load %arg6[%c0_76, %c0_77] : memref<8x32xf32, #tpu.memory_space<vmem>>, vector<8x32xf32>
    %c168 = arith.constant 168 : index
    %c0_78 = arith.constant 0 : index
    %299 = vector.load %arg1[%c168, %c0_78] : memref<280x128xf32, #tpu.memory_space<vmem>>, vector<32x128xf32>
    %cst_79 = arith.constant dense<0.000000e+00> : vector<8x128xf32>
    %300 = tpu.matmul %298, %299, %cst_79 {dimension_numbers = #tpu.dot_dimension_numbers<[1], [0], [0], [1], [0, 0, 1, 1], [], []>} : vector<8x32xf32>, vector<32x128xf32>, vector<8x128xf32> -> vector<8x128xf32>
    %c200 = arith.constant 200 : index
    %c0_80 = arith.constant 0 : index
    %301 = vector.load %arg1[%c200, %c0_80] : memref<280x128xf32, #tpu.memory_space<vmem>>, vector<1x128xf32>
    %302 = vector.broadcast %301 : vector<1x128xf32> to vector<8x128xf32>
    %303 = arith.addf %300, %302 : vector<8x128xf32>
    %cst_81 = arith.constant 0.000000e+00 : f32
    %304 = vector.broadcast %cst_81 : f32 to vector<8x128xf32>
    %305 = arith.maximumf %303, %304 : vector<8x128xf32>
    %306 = vector.extract_strided_slice %305 {offsets = [0, 0], sizes = [8, 64], strides = [1, 1]} : vector<8x128xf32> to vector<8x64xf32>
    %c208 = arith.constant 208 : index
    %c0_82 = arith.constant 0 : index
    %307 = vector.load %arg1[%c208, %c0_82] : memref<280x128xf32, #tpu.memory_space<vmem>>, vector<64x128xf32>
    %cst_83 = arith.constant dense<0.000000e+00> : vector<8x128xf32>
    %308 = tpu.matmul %306, %307, %cst_83 {dimension_numbers = #tpu.dot_dimension_numbers<[1], [0], [0], [1], [0, 0, 1, 1], [], []>} : vector<8x64xf32>, vector<64x128xf32>, vector<8x128xf32> -> vector<8x128xf32>
    %c272 = arith.constant 272 : index
    %c0_84 = arith.constant 0 : index
    %309 = vector.load %arg1[%c272, %c0_84] : memref<280x128xf32, #tpu.memory_space<vmem>>, vector<1x128xf32>
    %310 = vector.broadcast %309 : vector<1x128xf32> to vector<8x128xf32>
    %311 = arith.addf %308, %310 : vector<8x128xf32>
    %c0_85 = arith.constant 0 : index
    %c0_86 = arith.constant 0 : index
    %312 = vector.load %arg3[%c0_85, %c0_86] : memref<8x128xf32, #tpu.memory_space<vmem>>, vector<8x128xf32>
    tpu.vector_store %arg3[%c0_85, %c0_86], %311 {strides = array<i32>} : memref<8x128xf32, #tpu.memory_space<vmem>>, vector<8x128xf32>,
    return
  }
}

</mosaic_0001>

<llo_original>
// kernel: net_forward.1
$region0: #{net_forward.1}
  #allocation0 [shape = 'u32[]', space=smem, size = 0x4, offset = 0x4, fixed_abs, tag = 'smem constant byte address 0x4 - core index']
  #allocation1 [shape = 'u32[72,128]{1,0:T(1,128)}', space=vmem, size = 0x9000, scoped, tag = 'internal scratch']
  #allocation2 [shape = 'f32[8,32]{1,0:T(8,128)}', space=vmem, size = 0x1000, scoped, tag = 'scratch operand']
  #allocation3 [shape = 'f32[8,32]{1,0:T(8,128)}', space=vmem, size = 0x1000, scoped, tag = 'scratch operand']
  %s0 = inlined_call_operand.vmem [shape: f32[8,16], index: 0, kind: input, shape index: {}]
  %s1 = inlined_call_operand.hbm [shape: f32[280,128], index: 1, kind: input, shape index: {}]
  %s2 = inlined_call_operand.vmem [shape: f32[4,32], index: 2, kind: input, shape index: {}]
  %s3 = inlined_call_operand.vmem [shape: f32[8,128], index: 3, kind: output, shape index: {0}]
  %s4 = inlined_call_operand.vmem [shape: f32[4,32], index: 4, kind: output, shape index: {1}]
  %5 = xla_tuple %s3, %s4
  %s6 = sld [smem:[#allocation0]]
  $region34: #{net_forward.1} parent=0
    _
  %s8 = ssub.s32 1, %s6
  %s9 = scalar_select 0, %s8, %s6
  $region1: #{net_forward.1} parent=0
    #allocation4 [shape = 'u8[143360]{0}', space=vmem, size = 0x23000, scoped, tag = 'input window, operand 1, single buffered']
    #allocation5 [shape = 's32[1]{0}', space=sflag, size = 0x4, scoped, tag = 'scoped memory for net_forward.1']
    %10 = vsyncpa [#allocation5], 0
    // Predicated region
    $region2: #{net_forward.1} parent=1 // pred_check
      _
    $region3: #{net_forward.1} parent=1 // pred_check_branch
      %12 = sbr.rel (0) target = $region5
    $region4: #{net_forward.1} parent=1 // pred_region
      _
    $region5: #{net_forward.1} parent=1 // pred_fallthru
      _
    // Predicated region
    $region6: #{net_forward.1} parent=1 // pred_check
      _
    $region7: #{net_forward.1} parent=1 // pred_check_branch
      %14 = sbr.rel (0) target = $region9
    $region8: #{net_forward.1} parent=1 // pred_region
      %16 = vsyncadd [#allocation5], 0
      %s17 = sshll.u32 %s1, 4
      %s18 = int_to_ptr.hbm [resolvable:$true] %s17
      %s19 = sshll.u32 [#allocation4], 4
      %s20 = int_to_ptr.vmem [resolvable:$true] %s19
      %25 = dma.hbm_to_vmem [thread:$0]  %s18, 4480, %s20, [#allocation5], 128, 128, 8
    $region9: #{net_forward.1} parent=1 // pred_fallthru
      _
    // Predicated region
    $region10: #{net_forward.1} parent=1 // pred_check
      _
    $region11: #{net_forward.1} parent=1 // pred_check_branch
      %27 = sbr.rel (0) target = $region13
    $region12: #{net_forward.1} parent=1 // pred_region
      _
    $region13: #{net_forward.1} parent=1 // pred_fallthru
      _
    // Predicated region
    $region14: #{net_forward.1} parent=1 // pred_check
      _
    $region15: #{net_forward.1} parent=1 // pred_check_branch
      %29 = sbr.rel (0) target = $region17
    $region16: #{net_forward.1} parent=1 // pred_region
      %31 = dma.done [#allocation5], 4480
    $region17: #{net_forward.1} parent=1 // pred_fallthru
      _
    %v32 = vlaneseq
    %v33 = vand.u32 %v32, 127
    %vm34 = vcmp.ge.s32.totalorder %v33, 64
    %vm35 = vcmp.lt.s32.totalorder %v33, 96
    %vm36 = vmand %vm34, %vm35
    %v37 = vsel %vm36, 1.0, 0.5
    %v38 = vsel %vm36, 0.0, 0.5
    %v39 = vld [vmem:[#allocation4] sm:$0xff]
    %v40 = vld [vmem:[#allocation4 + $0x8] sm:$0xff]
    %v41 = vld [vmem:[#allocation4 + $0x10] sm:$0x1]
    %v42 = vld [vmem:[%s0] sm:$0xff]
    %v43 = vperm.slane %v41, 0
    %vm44 = vcmask 130048
    %v46 = vsel %vm44, %v42, 0
    %48 = vmatpush.msra.mxu0 0.0
    %49 = vmatpush.msra.mxu0 0.0
    %50 = vmatpush.msra.mxu0 0.0
    %51 = vmatpush.msra.mxu0 0.0
    %52 = vmatpush.msra.mxu0 0.0
    %53 = vmatpush.msra.mxu0 0.0
    %54 = vmatpush.msra.mxu0 0.0
    %55 = vmatpush.msra.mxu0 0.0
    %56 = vmatpush.msra.mxu0 0.0
    %57 = vmatpush.msra.mxu0 0.0
    %58 = vmatpush.msra.mxu0 0.0
    %59 = vmatpush.msra.mxu0 0.0
    %60 = vmatpush.msra.mxu0 0.0
    %61 = vmatpush.msra.mxu0 0.0
    %62 = vmatpush.msra.mxu0 %v40
    %63 = vmatpush.msra.mxu0 %v39
    %64 = vmatmul.f32.gmra.mxu0 %v46
    %v65 = vpop.f32.mrf.mxu0
    %v66 = vadd.f32 %v43, %v65
    %67 = vdwg.mxu0
    %v68 = vmax.f32 %v66, 0.0
    %v69 = vld [vmem:[#allocation4 + $0x18] sm:$0xff]
    %v70 = vld [vmem:[#allocation4 + $0x20] sm:$0xff]
    %v71 = vld [vmem:[#allocation4 + $0x28] sm:$0xff]
    %v72 = vld [vmem:[#allocation4 + $0x30] sm:$0xff]
    %v73 = vld [vmem:[#allocation4 + $0x58] sm:$0x1]
    %v74 = vperm.slane %v73, 0
    %vm75 = vcmask 261120
    %v77 = vsel %vm75, %v68, 0
    %79 = vmatpush.msra.mxu0 0.0
    %80 = vmatpush.msra.mxu0 0.0
    %81 = vmatpush.msra.mxu0 0.0
    %82 = vmatpush.msra.mxu0 0.0
    %83 = vmatpush.msra.mxu0 0.0
    %84 = vmatpush.msra.mxu0 0.0
    %85 = vmatpush.msra.mxu0 0.0
    %86 = vmatpush.msra.mxu0 0.0
    %87 = vmatpush.msra.mxu0 0.0
    %88 = vmatpush.msra.mxu0 0.0
    %89 = vmatpush.msra.mxu0 0.0
    %90 = vmatpush.msra.mxu0 0.0
    %91 = vmatpush.msra.mxu0 %v72
    %92 = vmatpush.msra.mxu0 %v71
    %93 = vmatpush.msra.mxu0 %v70
    %94 = vmatpush.msra.mxu0 %v69
    %95 = vmatmul.f32.gmra.mxu0 %v77
    %v96 = vpop.f32.mrf.mxu0
    %v97 = vadd.f32 %v74, %v96
    %98 = vdwg.mxu0
    %v99 = vld [vmem:[#allocation4 + $0x38] sm:$0xff]
    %v100 = vld [vmem:[#allocation4 + $0x40] sm:$0xff]
    %v101 = vld [vmem:[#allocation4 + $0x48] sm:$0xff]
    %v102 = vld [vmem:[#allocation4 + $0x50] sm:$0xff]
    %v103 = vld [vmem:[%s2] sm:$0x1]
    %v104 = vld [vmem:[%s2 + $0x2] sm:$0x1]
    %v106 = vsel %vm75, %v103, 0
    %108 = vmatpush.msra.mxu0 0.0
    %109 = vmatpush.msra.mxu0 0.0
    %110 = vmatpush.msra.mxu0 0.0
    %111 = vmatpush.msra.mxu0 0.0
    %112 = vmatpush.msra.mxu0 0.0
    %113 = vmatpush.msra.mxu0 0.0
    %114 = vmatpush.msra.mxu0 0.0
    %115 = vmatpush.msra.mxu0 0.0
    %116 = vmatpush.msra.mxu0 0.0
    %117 = vmatpush.msra.mxu0 0.0
    %118 = vmatpush.msra.mxu0 0.0
    %119 = vmatpush.msra.mxu0 0.0
    %120 = vmatpush.msra.mxu0 %v102
    %121 = vmatpush.msra.mxu0 %v101
    %122 = vmatpush.msra.mxu0 %v100
    %123 = vmatpush.msra.mxu0 %v99
    %124 = vmatmul.f32.gmra.mxu0 %v106
    %v125 = vpop.f32.mrf.mxu0
    %v126 = vadd.f32 0.0, %v125
    %127 = vdwg.mxu0
    %v128 = vadd.f32 %v97, %v126
    %v129 = vtanh.pop %v128
    %v130 = vmul.f32 %v129, %v37
    %v131 = vadd.f32 %v130, %v38
    %133 = vrot.lane.b32.xlu0 %v104, 32
    %v134 = vpop.permute.xlu0 %133
    %v136 = vmul.f32 %v131, %v134
    %138 = vrot.lane.b32.xlu0 %v131, 64
    %v139 = vpop.permute.xlu0 %138
    %v141 = vmul.f32 %v131, %v139
    %143 = vrot.lane.b32.xlu0 %v141, 32
    %v144 = vpop.permute.xlu0 %143
    %v146 = vadd.f32 %v136, %v144
    %v147 = vtanh.pop %v146
    %149 = vrot.lane.b32.xlu0 %v147, 64
    %v150 = vpop.permute.xlu0 %149
    %v152 = vmul.f32 %v131, %v150
    %154 = vrot.lane.b32.xlu0 %v152, 32
    %v155 = vpop.permute.xlu0 %154
    %vm157 = vcmask 253952
    %158 = vst.msk [vmem:[#allocation2] sm:$0x1] %vm157, %v155
    %v159 = vsel %vm75, %v155, 0
    %161 = vmatpush.msra.mxu0 0.0
    %162 = vmatpush.msra.mxu0 0.0
    %163 = vmatpush.msra.mxu0 0.0
    %164 = vmatpush.msra.mxu0 0.0
    %165 = vmatpush.msra.mxu0 0.0
    %166 = vmatpush.msra.mxu0 0.0
    %167 = vmatpush.msra.mxu0 0.0
    %168 = vmatpush.msra.mxu0 0.0
    %169 = vmatpush.msra.mxu0 0.0
    %170 = vmatpush.msra.mxu0 0.0
    %171 = vmatpush.msra.mxu0 0.0
    %172 = vmatpush.msra.mxu0 0.0
    %173 = vmatpush.msra.mxu0 %v102
    %174 = vmatpush.msra.mxu0 %v101
    %175 = vmatpush.msra.mxu0 %v100
    %176 = vmatpush.msra.mxu0 %v99
    %177 = vmatmul.f32.gmra.mxu0 %v159
    %v178 = vpop.f32.mrf.mxu0
    %v179 = vadd.f32 0.0, %v178
    %180 = vdwg.mxu0
    %v182 = vrot.slane %v179, 7
    %v184 = vadd.f32 %v97, %v182
    %v185 = vtanh.pop %v184
    %v186 = vmul.f32 %v185, %v37
    %v187 = vadd.f32 %v186, %v38
    %v189 = vrot.slane %v146, 7
    %v191 = vmul.f32 %v187, %v189
    %193 = vrot.lane.b32.xlu0 %v187, 64
    %v194 = vpop.permute.xlu0 %193
    %v196 = vmul.f32 %v187, %v194
    %198 = vrot.lane.b32.xlu0 %v196, 32
    %v199 = vpop.permute.xlu0 %198
    %v201 = vadd.f32 %v191, %v199
    %v202 = vtanh.pop %v201
    %204 = vrot.lane.b32.xlu0 %v202, 64
    %v205 = vpop.permute.xlu0 %204
    %v207 = vmul.f32 %v187, %v205
    %209 = vrot.lane.b32.xlu0 %v207, 32
    %v210 = vpop.permute.xlu0 %209
    %vm212 = vcmask 254977
    %213 = vst.msk [vmem:[#allocation2] sm:$0x2] %vm212, %v210
    %v214 = vrot.slane %v207, 1
    %215 = vrot.lane.b32.xlu0 %v214, 32
    %v216 = vpop.permute.xlu0 %215
    %v217 = vsel %vm75, %v216, 0
    %219 = vmatpush.msra.mxu0 0.0
    %220 = vmatpush.msra.mxu0 0.0
    %221 = vmatpush.msra.mxu0 0.0
    %222 = vmatpush.msra.mxu0 0.0
    %223 = vmatpush.msra.mxu0 0.0
    %224 = vmatpush.msra.mxu0 0.0
    %225 = vmatpush.msra.mxu0 0.0
    %226 = vmatpush.msra.mxu0 0.0
    %227 = vmatpush.msra.mxu0 0.0
    %228 = vmatpush.msra.mxu0 0.0
    %229 = vmatpush.msra.mxu0 0.0
    %230 = vmatpush.msra.mxu0 0.0
    %231 = vmatpush.msra.mxu0 %v102
    %232 = vmatpush.msra.mxu0 %v101
    %233 = vmatpush.msra.mxu0 %v100
    %234 = vmatpush.msra.mxu0 %v99
    %235 = vmatmul.f32.gmra.mxu0 %v217
    %v236 = vpop.f32.mrf.mxu0
    %v237 = vadd.f32 0.0, %v236
    %238 = vdwg.mxu0
    %v240 = vrot.slane %v237, 6
    %v242 = vadd.f32 %v97, %v240
    %v243 = vtanh.pop %v242
    %v244 = vmul.f32 %v243, %v37
    %v245 = vadd.f32 %v244, %v38
    %v247 = vrot.slane %v201, 7
    %v249 = vmul.f32 %v245, %v247
    %251 = vrot.lane.b32.xlu0 %v245, 64
    %v252 = vpop.permute.xlu0 %251
    %v254 = vmul.f32 %v245, %v252
    %256 = vrot.lane.b32.xlu0 %v254, 32
    %v257 = vpop.permute.xlu0 %256
    %v259 = vadd.f32 %v249, %v257
    %v260 = vtanh.pop %v259
    %262 = vrot.lane.b32.xlu0 %v260, 64
    %v263 = vpop.permute.xlu0 %262
    %v265 = vmul.f32 %v245, %v263
    %267 = vrot.lane.b32.xlu0 %v265, 32
    %v268 = vpop.permute.xlu0 %267
    %vm270 = vcmask 256002
    %271 = vst.msk [vmem:[#allocation2] sm:$0x4] %vm270, %v268
    %v272 = vrot.slane %v265, 2
    %273 = vrot.lane.b32.xlu0 %v272, 32
    %v274 = vpop.permute.xlu0 %273
    %v275 = vsel %vm75, %v274, 0
    %277 = vmatpush.msra.mxu0 0.0
    %278 = vmatpush.msra.mxu0 0.0
    %279 = vmatpush.msra.mxu0 0.0
    %280 = vmatpush.msra.mxu0 0.0
    %281 = vmatpush.msra.mxu0 0.0
    %282 = vmatpush.msra.mxu0 0.0
    %283 = vmatpush.msra.mxu0 0.0
    %284 = vmatpush.msra.mxu0 0.0
    %285 = vmatpush.msra.mxu0 0.0
    %286 = vmatpush.msra.mxu0 0.0
    %287 = vmatpush.msra.mxu0 0.0
    %288 = vmatpush.msra.mxu0 0.0
    %289 = vmatpush.msra.mxu0 %v102
    %290 = vmatpush.msra.mxu0 %v101
    %291 = vmatpush.msra.mxu0 %v100
    %292 = vmatpush.msra.mxu0 %v99
    %293 = vmatmul.f32.gmra.mxu0 %v275
    %v294 = vpop.f32.mrf.mxu0
    %v295 = vadd.f32 0.0, %v294
    %296 = vdwg.mxu0
    %v298 = vrot.slane %v295, 5
    %v300 = vadd.f32 %v97, %v298
    %v301 = vtanh.pop %v300
    %v302 = vmul.f32 %v301, %v37
    %v303 = vadd.f32 %v302, %v38
    %v305 = vrot.slane %v259, 7
    %v307 = vmul.f32 %v303, %v305
    %309 = vrot.lane.b32.xlu0 %v303, 64
    %v310 = vpop.permute.xlu0 %309
    %v312 = vmul.f32 %v303, %v310
    %314 = vrot.lane.b32.xlu0 %v312, 32
    %v315 = vpop.permute.xlu0 %314
    %v317 = vadd.f32 %v307, %v315
    %v318 = vtanh.pop %v317
    %320 = vrot.lane.b32.xlu0 %v318, 64
    %v321 = vpop.permute.xlu0 %320
    %v323 = vmul.f32 %v303, %v321
    %325 = vrot.lane.b32.xlu0 %v323, 32
    %v326 = vpop.permute.xlu0 %325
    %vm328 = vcmask 257027
    %329 = vst.msk [vmem:[#allocation2] sm:$0x8] %vm328, %v326
    %v330 = vrot.slane %v323, 3
    %331 = vrot.lane.b32.xlu0 %v330, 32
    %v332 = vpop.permute.xlu0 %331
    %v333 = vsel %vm75, %v332, 0
    %335 = vmatpush.msra.mxu0 0.0
    %336 = vmatpush.msra.mxu0 0.0
    %337 = vmatpush.msra.mxu0 0.0
    %338 = vmatpush.msra.mxu0 0.0
    %339 = vmatpush.msra.mxu0 0.0
    %340 = vmatpush.msra.mxu0 0.0
    %341 = vmatpush.msra.mxu0 0.0
    %342 = vmatpush.msra.mxu0 0.0
    %343 = vmatpush.msra.mxu0 0.0
    %344 = vmatpush.msra.mxu0 0.0
    %345 = vmatpush.msra.mxu0 0.0
    %346 = vmatpush.msra.mxu0 0.0
    %347 = vmatpush.msra.mxu0 %v102
    %348 = vmatpush.msra.mxu0 %v101
    %349 = vmatpush.msra.mxu0 %v100
    %350 = vmatpush.msra.mxu0 %v99
    %351 = vmatmul.f32.gmra.mxu0 %v333
    %v352 = vpop.f32.mrf.mxu0
    %v353 = vadd.f32 0.0, %v352
    %354 = vdwg.mxu0
    %v356 = vrot.slane %v353, 4
    %v358 = vadd.f32 %v97, %v356
    %v359 = vtanh.pop %v358
    %v360 = vmul.f32 %v359, %v37
    %v361 = vadd.f32 %v360, %v38
    %v363 = vrot.slane %v317, 7
    %v365 = vmul.f32 %v361, %v363
    %367 = vrot.lane.b32.xlu0 %v361, 64
    %v368 = vpop.permute.xlu0 %367
    %v370 = vmul.f32 %v361, %v368
    %372 = vrot.lane.b32.xlu0 %v370, 32
    %v373 = vpop.permute.xlu0 %372
    %v375 = vadd.f32 %v365, %v373
    %v376 = vtanh.pop %v375
    %378 = vrot.lane.b32.xlu0 %v376, 64
    %v379 = vpop.permute.xlu0 %378
    %v381 = vmul.f32 %v361, %v379
    %383 = vrot.lane.b32.xlu0 %v381, 32
    %v384 = vpop.permute.xlu0 %383
    %vm386 = vcmask 258052
    %387 = vst.msk [vmem:[#allocation2] sm:$0x10] %vm386, %v384
    %v388 = vrot.slane %v381, 4
    %389 = vrot.lane.b32.xlu0 %v388, 32
    %v390 = vpop.permute.xlu0 %389
    %v391 = vsel %vm75, %v390, 0
    %393 = vmatpush.msra.mxu0 0.0
    %394 = vmatpush.msra.mxu0 0.0
    %395 = vmatpush.msra.mxu0 0.0
    %396 = vmatpush.msra.mxu0 0.0
    %397 = vmatpush.msra.mxu0 0.0
    %398 = vmatpush.msra.mxu0 0.0
    %399 = vmatpush.msra.mxu0 0.0
    %400 = vmatpush.msra.mxu0 0.0
    %401 = vmatpush.msra.mxu0 0.0
    %402 = vmatpush.msra.mxu0 0.0
    %403 = vmatpush.msra.mxu0 0.0
    %404 = vmatpush.msra.mxu0 0.0
    %405 = vmatpush.msra.mxu0 %v102
    %406 = vmatpush.msra.mxu0 %v101
    %407 = vmatpush.msra.mxu0 %v100
    %408 = vmatpush.msra.mxu0 %v99
    %409 = vmatmul.f32.gmra.mxu0 %v391
    %v410 = vpop.f32.mrf.mxu0
    %v411 = vadd.f32 0.0, %v410
    %412 = vdwg.mxu0
    %v414 = vrot.slane %v411, 3
    %v416 = vadd.f32 %v97, %v414
    %v417 = vtanh.pop %v416
    %v418 = vmul.f32 %v417, %v37
    %v419 = vadd.f32 %v418, %v38
    %v421 = vrot.slane %v375, 7
    %v423 = vmul.f32 %v419, %v421
    %425 = vrot.lane.b32.xlu0 %v419, 64
    %v426 = vpop.permute.xlu0 %425
    %v428 = vmul.f32 %v419, %v426
    %430 = vrot.lane.b32.xlu0 %v428, 32
    %v431 = vpop.permute.xlu0 %430
    %v433 = vadd.f32 %v423, %v431
    %v434 = vtanh.pop %v433
    %436 = vrot.lane.b32.xlu0 %v434, 64
    %v437 = vpop.permute.xlu0 %436
    %v439 = vmul.f32 %v419, %v437
    %441 = vrot.lane.b32.xlu0 %v439, 32
    %v442 = vpop.permute.xlu0 %441
    %vm444 = vcmask 259077
    %445 = vst.msk [vmem:[#allocation2] sm:$0x20] %vm444, %v442
    %v446 = vrot.slane %v439, 5
    %447 = vrot.lane.b32.xlu0 %v446, 32
    %v448 = vpop.permute.xlu0 %447
    %v449 = vsel %vm75, %v448, 0
    %451 = vmatpush.msra.mxu0 0.0
    %452 = vmatpush.msra.mxu0 0.0
    %453 = vmatpush.msra.mxu0 0.0
    %454 = vmatpush.msra.mxu0 0.0
    %455 = vmatpush.msra.mxu0 0.0
    %456 = vmatpush.msra.mxu0 0.0
    %457 = vmatpush.msra.mxu0 0.0
    %458 = vmatpush.msra.mxu0 0.0
    %459 = vmatpush.msra.mxu0 0.0
    %460 = vmatpush.msra.mxu0 0.0
    %461 = vmatpush.msra.mxu0 0.0
    %462 = vmatpush.msra.mxu0 0.0
    %463 = vmatpush.msra.mxu0 %v102
    %464 = vmatpush.msra.mxu0 %v101
    %465 = vmatpush.msra.mxu0 %v100
    %466 = vmatpush.msra.mxu0 %v99
    %467 = vmatmul.f32.gmra.mxu0 %v449
    %v468 = vpop.f32.mrf.mxu0
    %v469 = vadd.f32 0.0, %v468
    %470 = vdwg.mxu0
    %v472 = vrot.slane %v469, 2
    %v474 = vadd.f32 %v97, %v472
    %v475 = vtanh.pop %v474
    %v476 = vmul.f32 %v475, %v37
    %v477 = vadd.f32 %v476, %v38
    %v479 = vrot.slane %v433, 7
    %v481 = vmul.f32 %v477, %v479
    %483 = vrot.lane.b32.xlu0 %v477, 64
    %v484 = vpop.permute.xlu0 %483
    %v486 = vmul.f32 %v477, %v484
    %488 = vrot.lane.b32.xlu0 %v486, 32
    %v489 = vpop.permute.xlu0 %488
    %v491 = vadd.f32 %v481, %v489
    %v492 = vtanh.pop %v491
    %494 = vrot.lane.b32.xlu0 %v492, 64
    %v495 = vpop.permute.xlu0 %494
    %v497 = vmul.f32 %v477, %v495
    %499 = vrot.lane.b32.xlu0 %v497, 32
    %v500 = vpop.permute.xlu0 %499
    %vm502 = vcmask 260102
    %503 = vst.msk [vmem:[#allocation2] sm:$0x40] %vm502, %v500
    %v504 = vrot.slane %v497, 6
    %505 = vrot.lane.b32.xlu0 %v504, 32
    %v506 = vpop.permute.xlu0 %505
    %v507 = vsel %vm75, %v506, 0
    %509 = vmatpush.msra.mxu0 0.0
    %510 = vmatpush.msra.mxu0 0.0
    %511 = vmatpush.msra.mxu0 0.0
    %512 = vmatpush.msra.mxu0 0.0
    %513 = vmatpush.msra.mxu0 0.0
    %514 = vmatpush.msra.mxu0 0.0
    %515 = vmatpush.msra.mxu0 0.0
    %516 = vmatpush.msra.mxu0 0.0
    %517 = vmatpush.msra.mxu0 0.0
    %518 = vmatpush.msra.mxu0 0.0
    %519 = vmatpush.msra.mxu0 0.0
    %520 = vmatpush.msra.mxu0 0.0
    %521 = vmatpush.msra.mxu0 %v102
    %522 = vmatpush.msra.mxu0 %v101
    %523 = vmatpush.msra.mxu0 %v100
    %524 = vmatpush.msra.mxu0 %v99
    %525 = vmatmul.f32.gmra.mxu0 %v507
    %v526 = vpop.f32.mrf.mxu0
    %v527 = vadd.f32 0.0, %v526
    %528 = vdwg.mxu0
    %v530 = vrot.slane %v527, 1
    %v532 = vadd.f32 %v97, %v530
    %v533 = vtanh.pop %v532
    %v534 = vmul.f32 %v533, %v37
    %v535 = vadd.f32 %v534, %v38
    %v537 = vrot.slane %v491, 7
    %v539 = vmul.f32 %v535, %v537
    %541 = vrot.lane.b32.xlu0 %v535, 64
    %v542 = vpop.permute.xlu0 %541
    %v544 = vmul.f32 %v535, %v542
    %546 = vrot.lane.b32.xlu0 %v544, 32
    %v547 = vpop.permute.xlu0 %546
    %v549 = vadd.f32 %v539, %v547
    %v550 = vtanh.pop %v549
    %552 = vrot.lane.b32.xlu0 %v550, 64
    %v553 = vpop.permute.xlu0 %552
    %v555 = vmul.f32 %v535, %v553
    %557 = vrot.lane.b32.xlu0 %v555, 32
    %v558 = vpop.permute.xlu0 %557
    %vm560 = vcmask 261127
    %561 = vst.msk [vmem:[#allocation2] sm:$0x80] %vm560, %v558
    %562 = vst.msk [vmem:[%s4 - $0x7] sm:$0x80] %vm560, %v558
    %564 = vrot.lane.b32.xlu0 %v549, 96
    %v565 = vpop.permute.xlu0 %564
    %567 = vst.msk [vmem:[%s4 - $0x5] sm:$0x80] %vm560, %v565
    %v568 = vld [vmem:[#allocation2] sm:$0xff]
    %v569 = vld [vmem:[#allocation4 + $0x60] sm:$0xff]
    %v570 = vld [vmem:[#allocation4 + $0x68] sm:$0xff]
    %v571 = vld [vmem:[#allocation4 + $0x70] sm:$0xff]
    %v572 = vld [vmem:[#allocation4 + $0x78] sm:$0xff]
    %v573 = vld [vmem:[#allocation4 + $0xa0] sm:$0x1]
    %v574 = vperm.slane %v573, 0
    %v576 = vsel %vm75, %v568, 0
    %578 = vmatpush.msra.mxu0 0.0
    %579 = vmatpush.msra.mxu0 0.0
    %580 = vmatpush.msra.mxu0 0.0
    %581 = vmatpush.msra.mxu0 0.0
    %582 = vmatpush.msra.mxu0 0.0
    %583 = vmatpush.msra.mxu0 0.0
    %584 = vmatpush.msra.mxu0 0.0
    %585 = vmatpush.msra.mxu0 0.0
    %586 = vmatpush.msra.mxu0 0.0
    %587 = vmatpush.msra.mxu0 0.0
    %588 = vmatpush.msra.mxu0 0.0
    %589 = vmatpush.msra.mxu0 0.0
    %590 = vmatpush.msra.mxu0 %v572
    %591 = vmatpush.msra.mxu0 %v571
    %592 = vmatpush.msra.mxu0 %v570
    %593 = vmatpush.msra.mxu0 %v569
    %594 = vmatmul.f32.gmra.mxu0 %v576
    %v595 = vpop.f32.mrf.mxu0
    %v596 = vadd.f32 %v574, %v595
    %597 = vdwg.mxu0
    %v598 = vld [vmem:[#allocation4 + $0x80] sm:$0xff]
    %v599 = vld [vmem:[#allocation4 + $0x88] sm:$0xff]
    %v600 = vld [vmem:[#allocation4 + $0x90] sm:$0xff]
    %v601 = vld [vmem:[#allocation4 + $0x98] sm:$0xff]
    %v602 = vld [vmem:[%s2 + $0x1] sm:$0x1]
    %v603 = vld [vmem:[%s2 + $0x3] sm:$0x1]
    %v605 = vsel %vm75, %v602, 0
    %607 = vmatpush.msra.mxu0 0.0
    %608 = vmatpush.msra.mxu0 0.0
    %609 = vmatpush.msra.mxu0 0.0
    %610 = vmatpush.msra.mxu0 0.0
    %611 = vmatpush.msra.mxu0 0.0
    %612 = vmatpush.msra.mxu0 0.0
    %613 = vmatpush.msra.mxu0 0.0
    %614 = vmatpush.msra.mxu0 0.0
    %615 = vmatpush.msra.mxu0 0.0
    %616 = vmatpush.msra.mxu0 0.0
    %617 = vmatpush.msra.mxu0 0.0
    %618 = vmatpush.msra.mxu0 0.0
    %619 = vmatpush.msra.mxu0 %v601
    %620 = vmatpush.msra.mxu0 %v600
    %621 = vmatpush.msra.mxu0 %v599
    %622 = vmatpush.msra.mxu0 %v598
    %623 = vmatmul.f32.gmra.mxu0 %v605
    %v624 = vpop.f32.mrf.mxu0
    %v625 = vadd.f32 0.0, %v624
    %626 = vdwg.mxu0
    %v627 = vadd.f32 %v596, %v625
    %v628 = vtanh.pop %v627
    %v629 = vmul.f32 %v628, %v37
    %v630 = vadd.f32 %v629, %v38
    %632 = vrot.lane.b32.xlu0 %v603, 32
    %v633 = vpop.permute.xlu0 %632
    %v635 = vmul.f32 %v630, %v633
    %637 = vrot.lane.b32.xlu0 %v630, 64
    %v638 = vpop.permute.xlu0 %637
    %v640 = vmul.f32 %v630, %v638
    %642 = vrot.lane.b32.xlu0 %v640, 32
    %v643 = vpop.permute.xlu0 %642
    %v645 = vadd.f32 %v635, %v643
    %v646 = vtanh.pop %v645
    %648 = vrot.lane.b32.xlu0 %v646, 64
    %v649 = vpop.permute.xlu0 %648
    %v651 = vmul.f32 %v630, %v649
    %653 = vrot.lane.b32.xlu0 %v651, 32
    %v654 = vpop.permute.xlu0 %653
    %656 = vst.msk [vmem:[#allocation3] sm:$0x1] %vm157, %v654
    %v657 = vsel %vm75, %v654, 0
    %659 = vmatpush.msra.mxu0 0.0
    %660 = vmatpush.msra.mxu0 0.0
    %661 = vmatpush.msra.mxu0 0.0
    %662 = vmatpush.msra.mxu0 0.0
    %663 = vmatpush.msra.mxu0 0.0
    %664 = vmatpush.msra.mxu0 0.0
    %665 = vmatpush.msra.mxu0 0.0
    %666 = vmatpush.msra.mxu0 0.0
    %667 = vmatpush.msra.mxu0 0.0
    %668 = vmatpush.msra.mxu0 0.0
    %669 = vmatpush.msra.mxu0 0.0
    %670 = vmatpush.msra.mxu0 0.0
    %671 = vmatpush.msra.mxu0 %v601
    %672 = vmatpush.msra.mxu0 %v600
    %673 = vmatpush.msra.mxu0 %v599
    %674 = vmatpush.msra.mxu0 %v598
    %675 = vmatmul.f32.gmra.mxu0 %v657
    %v676 = vpop.f32.mrf.mxu0
    %v677 = vadd.f32 0.0, %v676
    %678 = vdwg.mxu0
    %v680 = vrot.slane %v677, 7
    %v682 = vadd.f32 %v596, %v680
    %v683 = vtanh.pop %v682
    %v684 = vmul.f32 %v683, %v37
    %v685 = vadd.f32 %v684, %v38
    %v687 = vrot.slane %v645, 7
    %v689 = vmul.f32 %v685, %v687
    %691 = vrot.lane.b32.xlu0 %v685, 64
    %v692 = vpop.permute.xlu0 %691
    %v694 = vmul.f32 %v685, %v692
    %696 = vrot.lane.b32.xlu0 %v694, 32
    %v697 = vpop.permute.xlu0 %696
    %v699 = vadd.f32 %v689, %v697
    %v700 = vtanh.pop %v699
    %702 = vrot.lane.b32.xlu0 %v700, 64
    %v703 = vpop.permute.xlu0 %702
    %v705 = vmul.f32 %v685, %v703
    %707 = vrot.lane.b32.xlu0 %v705, 32
    %v708 = vpop.permute.xlu0 %707
    %710 = vst.msk [vmem:[#allocation3] sm:$0x2] %vm212, %v708
    %v711 = vrot.slane %v705, 1
    %712 = vrot.lane.b32.xlu0 %v711, 32
    %v713 = vpop.permute.xlu0 %712
    %v714 = vsel %vm75, %v713, 0
    %716 = vmatpush.msra.mxu0 0.0
    %717 = vmatpush.msra.mxu0 0.0
    %718 = vmatpush.msra.mxu0 0.0
    %719 = vmatpush.msra.mxu0 0.0
    %720 = vmatpush.msra.mxu0 0.0
    %721 = vmatpush.msra.mxu0 0.0
    %722 = vmatpush.msra.mxu0 0.0
    %723 = vmatpush.msra.mxu0 0.0
    %724 = vmatpush.msra.mxu0 0.0
    %725 = vmatpush.msra.mxu0 0.0
    %726 = vmatpush.msra.mxu0 0.0
    %727 = vmatpush.msra.mxu0 0.0
    %728 = vmatpush.msra.mxu0 %v601
    %729 = vmatpush.msra.mxu0 %v600
    %730 = vmatpush.msra.mxu0 %v599
    %731 = vmatpush.msra.mxu0 %v598
    %732 = vmatmul.f32.gmra.mxu0 %v714
    %v733 = vpop.f32.mrf.mxu0
    %v734 = vadd.f32 0.0, %v733
    %735 = vdwg.mxu0
    %v737 = vrot.slane %v734, 6
    %v739 = vadd.f32 %v596, %v737
    %v740 = vtanh.pop %v739
    %v741 = vmul.f32 %v740, %v37
    %v742 = vadd.f32 %v741, %v38
    %v744 = vrot.slane %v699, 7
    %v746 = vmul.f32 %v742, %v744
    %748 = vrot.lane.b32.xlu0 %v742, 64
    %v749 = vpop.permute.xlu0 %748
    %v751 = vmul.f32 %v742, %v749
    %753 = vrot.lane.b32.xlu0 %v751, 32
    %v754 = vpop.permute.xlu0 %753
    %v756 = vadd.f32 %v746, %v754
    %v757 = vtanh.pop %v756
    %759 = vrot.lane.b32.xlu0 %v757, 64
    %v760 = vpop.permute.xlu0 %759
    %v762 = vmul.f32 %v742, %v760
    %764 = vrot.lane.b32.xlu0 %v762, 32
    %v765 = vpop.permute.xlu0 %764
    %767 = vst.msk [vmem:[#allocation3] sm:$0x4] %vm270, %v765
    %v768 = vrot.slane %v762, 2
    %769 = vrot.lane.b32.xlu0 %v768, 32
    %v770 = vpop.permute.xlu0 %769
    %v771 = vsel %vm75, %v770, 0
    %773 = vmatpush.msra.mxu0 0.0
    %774 = vmatpush.msra.mxu0 0.0
    %775 = vmatpush.msra.mxu0 0.0
    %776 = vmatpush.msra.mxu0 0.0
    %777 = vmatpush.msra.mxu0 0.0
    %778 = vmatpush.msra.mxu0 0.0
    %779 = vmatpush.msra.mxu0 0.0
    %780 = vmatpush.msra.mxu0 0.0
    %781 = vmatpush.msra.mxu0 0.0
    %782 = vmatpush.msra.mxu0 0.0
    %783 = vmatpush.msra.mxu0 0.0
    %784 = vmatpush.msra.mxu0 0.0
    %785 = vmatpush.msra.mxu0 %v601
    %786 = vmatpush.msra.mxu0 %v600
    %787 = vmatpush.msra.mxu0 %v599
    %788 = vmatpush.msra.mxu0 %v598
    %789 = vmatmul.f32.gmra.mxu0 %v771
    %v790 = vpop.f32.mrf.mxu0
    %v791 = vadd.f32 0.0, %v790
    %792 = vdwg.mxu0
    %v794 = vrot.slane %v791, 5
    %v796 = vadd.f32 %v596, %v794
    %v797 = vtanh.pop %v796
    %v798 = vmul.f32 %v797, %v37
    %v799 = vadd.f32 %v798, %v38
    %v801 = vrot.slane %v756, 7
    %v803 = vmul.f32 %v799, %v801
    %805 = vrot.lane.b32.xlu0 %v799, 64
    %v806 = vpop.permute.xlu0 %805
    %v808 = vmul.f32 %v799, %v806
    %810 = vrot.lane.b32.xlu0 %v808, 32
    %v811 = vpop.permute.xlu0 %810
    %v813 = vadd.f32 %v803, %v811
    %v814 = vtanh.pop %v813
    %816 = vrot.lane.b32.xlu0 %v814, 64
    %v817 = vpop.permute.xlu0 %816
    %v819 = vmul.f32 %v799, %v817
    %821 = vrot.lane.b32.xlu0 %v819, 32
    %v822 = vpop.permute.xlu0 %821
    %824 = vst.msk [vmem:[#allocation3] sm:$0x8] %vm328, %v822
    %v825 = vrot.slane %v819, 3
    %826 = vrot.lane.b32.xlu0 %v825, 32
    %v827 = vpop.permute.xlu0 %826
    %v828 = vsel %vm75, %v827, 0
    %830 = vmatpush.msra.mxu0 0.0
    %831 = vmatpush.msra.mxu0 0.0
    %832 = vmatpush.msra.mxu0 0.0
    %833 = vmatpush.msra.mxu0 0.0
    %834 = vmatpush.msra.mxu0 0.0
    %835 = vmatpush.msra.mxu0 0.0
    %836 = vmatpush.msra.mxu0 0.0
    %837 = vmatpush.msra.mxu0 0.0
    %838 = vmatpush.msra.mxu0 0.0
    %839 = vmatpush.msra.mxu0 0.0
    %840 = vmatpush.msra.mxu0 0.0
    %841 = vmatpush.msra.mxu0 0.0
    %842 = vmatpush.msra.mxu0 %v601
    %843 = vmatpush.msra.mxu0 %v600
    %844 = vmatpush.msra.mxu0 %v599
    %845 = vmatpush.msra.mxu0 %v598
    %846 = vmatmul.f32.gmra.mxu0 %v828
    %v847 = vpop.f32.mrf.mxu0
    %v848 = vadd.f32 0.0, %v847
    %849 = vdwg.mxu0
    %v851 = vrot.slane %v848, 4
    %v853 = vadd.f32 %v596, %v851
    %v854 = vtanh.pop %v853
    %v855 = vmul.f32 %v854, %v37
    %v856 = vadd.f32 %v855, %v38
    %v858 = vrot.slane %v813, 7
    %v860 = vmul.f32 %v856, %v858
    %862 = vrot.lane.b32.xlu0 %v856, 64
    %v863 = vpop.permute.xlu0 %862
    %v865 = vmul.f32 %v856, %v863
    %867 = vrot.lane.b32.xlu0 %v865, 32
    %v868 = vpop.permute.xlu0 %867
    %v870 = vadd.f32 %v860, %v868
    %v871 = vtanh.pop %v870
    %873 = vrot.lane.b32.xlu0 %v871, 64
    %v874 = vpop.permute.xlu0 %873
    %v876 = vmul.f32 %v856, %v874
    %878 = vrot.lane.b32.xlu0 %v876, 32
    %v879 = vpop.permute.xlu0 %878
    %881 = vst.msk [vmem:[#allocation3] sm:$0x10] %vm386, %v879
    %v882 = vrot.slane %v876, 4
    %883 = vrot.lane.b32.xlu0 %v882, 32
    %v884 = vpop.permute.xlu0 %883
    %v885 = vsel %vm75, %v884, 0
    %887 = vmatpush.msra.mxu0 0.0
    %888 = vmatpush.msra.mxu0 0.0
    %889 = vmatpush.msra.mxu0 0.0
    %890 = vmatpush.msra.mxu0 0.0
    %891 = vmatpush.msra.mxu0 0.0
    %892 = vmatpush.msra.mxu0 0.0
    %893 = vmatpush.msra.mxu0 0.0
    %894 = vmatpush.msra.mxu0 0.0
    %895 = vmatpush.msra.mxu0 0.0
    %896 = vmatpush.msra.mxu0 0.0
    %897 = vmatpush.msra.mxu0 0.0
    %898 = vmatpush.msra.mxu0 0.0
    %899 = vmatpush.msra.mxu0 %v601
    %900 = vmatpush.msra.mxu0 %v600
    %901 = vmatpush.msra.mxu0 %v599
    %902 = vmatpush.msra.mxu0 %v598
    %903 = vmatmul.f32.gmra.mxu0 %v885
    %v904 = vpop.f32.mrf.mxu0
    %v905 = vadd.f32 0.0, %v904
    %906 = vdwg.mxu0
    %v908 = vrot.slane %v905, 3
    %v910 = vadd.f32 %v596, %v908
    %v911 = vtanh.pop %v910
    %v912 = vmul.f32 %v911, %v37
    %v913 = vadd.f32 %v912, %v38
    %v915 = vrot.slane %v870, 7
    %v917 = vmul.f32 %v913, %v915
    %919 = vrot.lane.b32.xlu0 %v913, 64
    %v920 = vpop.permute.xlu0 %919
    %v922 = vmul.f32 %v913, %v920
    %924 = vrot.lane.b32.xlu0 %v922, 32
    %v925 = vpop.permute.xlu0 %924
    %v927 = vadd.f32 %v917, %v925
    %v928 = vtanh.pop %v927
    %930 = vrot.lane.b32.xlu0 %v928, 64
    %v931 = vpop.permute.xlu0 %930
    %v933 = vmul.f32 %v913, %v931
    %935 = vrot.lane.b32.xlu0 %v933, 32
    %v936 = vpop.permute.xlu0 %935
    %938 = vst.msk [vmem:[#allocation3] sm:$0x20] %vm444, %v936
    %v939 = vrot.slane %v933, 5
    %940 = vrot.lane.b32.xlu0 %v939, 32
    %v941 = vpop.permute.xlu0 %940
    %v942 = vsel %vm75, %v941, 0
    %944 = vmatpush.msra.mxu0 0.0
    %945 = vmatpush.msra.mxu0 0.0
    %946 = vmatpush.msra.mxu0 0.0
    %947 = vmatpush.msra.mxu0 0.0
    %948 = vmatpush.msra.mxu0 0.0
    %949 = vmatpush.msra.mxu0 0.0
    %950 = vmatpush.msra.mxu0 0.0
    %951 = vmatpush.msra.mxu0 0.0
    %952 = vmatpush.msra.mxu0 0.0
    %953 = vmatpush.msra.mxu0 0.0
    %954 = vmatpush.msra.mxu0 0.0
    %955 = vmatpush.msra.mxu0 0.0
    %956 = vmatpush.msra.mxu0 %v601
    %957 = vmatpush.msra.mxu0 %v600
    %958 = vmatpush.msra.mxu0 %v599
    %959 = vmatpush.msra.mxu0 %v598
    %960 = vmatmul.f32.gmra.mxu0 %v942
    %v961 = vpop.f32.mrf.mxu0
    %v962 = vadd.f32 0.0, %v961
    %963 = vdwg.mxu0
    %v965 = vrot.slane %v962, 2
    %v967 = vadd.f32 %v596, %v965
    %v968 = vtanh.pop %v967
    %v969 = vmul.f32 %v968, %v37
    %v970 = vadd.f32 %v969, %v38
    %v972 = vrot.slane %v927, 7
    %v974 = vmul.f32 %v970, %v972
    %976 = vrot.lane.b32.xlu0 %v970, 64
    %v977 = vpop.permute.xlu0 %976
    %v979 = vmul.f32 %v970, %v977
    %981 = vrot.lane.b32.xlu0 %v979, 32
    %v982 = vpop.permute.xlu0 %981
    %v984 = vadd.f32 %v974, %v982
    %v985 = vtanh.pop %v984
    %987 = vrot.lane.b32.xlu0 %v985, 64
    %v988 = vpop.permute.xlu0 %987
    %v990 = vmul.f32 %v970, %v988
    %992 = vrot.lane.b32.xlu0 %v990, 32
    %v993 = vpop.permute.xlu0 %992
    %995 = vst.msk [vmem:[#allocation3] sm:$0x40] %vm502, %v993
    %v996 = vrot.slane %v990, 6
    %997 = vrot.lane.b32.xlu0 %v996, 32
    %v998 = vpop.permute.xlu0 %997
    %v999 = vsel %vm75, %v998, 0
    %1001 = vmatpush.msra.mxu0 0.0
    %1002 = vmatpush.msra.mxu0 0.0
    %1003 = vmatpush.msra.mxu0 0.0
    %1004 = vmatpush.msra.mxu0 0.0
    %1005 = vmatpush.msra.mxu0 0.0
    %1006 = vmatpush.msra.mxu0 0.0
    %1007 = vmatpush.msra.mxu0 0.0
    %1008 = vmatpush.msra.mxu0 0.0
    %1009 = vmatpush.msra.mxu0 0.0
    %1010 = vmatpush.msra.mxu0 0.0
    %1011 = vmatpush.msra.mxu0 0.0
    %1012 = vmatpush.msra.mxu0 0.0
    %1013 = vmatpush.msra.mxu0 %v601
    %1014 = vmatpush.msra.mxu0 %v600
    %1015 = vmatpush.msra.mxu0 %v599
    %1016 = vmatpush.msra.mxu0 %v598
    %1017 = vmatmul.f32.gmra.mxu0 %v999
    %v1018 = vpop.f32.mrf.mxu0
    %v1019 = vadd.f32 0.0, %v1018
    %1020 = vdwg.mxu0
    %v1022 = vrot.slane %v1019, 1
    %v1024 = vadd.f32 %v596, %v1022
    %v1025 = vtanh.pop %v1024
    %v1026 = vmul.f32 %v1025, %v37
    %v1027 = vadd.f32 %v1026, %v38
    %v1029 = vrot.slane %v984, 7
    %v1031 = vmul.f32 %v1027, %v1029
    %1033 = vrot.lane.b32.xlu0 %v1027, 64
    %v1034 = vpop.permute.xlu0 %1033
    %v1036 = vmul.f32 %v1027, %v1034
    %1038 = vrot.lane.b32.xlu0 %v1036, 32
    %v1039 = vpop.permute.xlu0 %1038
    %v1041 = vadd.f32 %v1031, %v1039
    %v1042 = vtanh.pop %v1041
    %1044 = vrot.lane.b32.xlu0 %v1042, 64
    %v1045 = vpop.permute.xlu0 %1044
    %v1047 = vmul.f32 %v1027, %v1045
    %1049 = vrot.lane.b32.xlu0 %v1047, 32
    %v1050 = vpop.permute.xlu0 %1049
    %1052 = vst.msk [vmem:[#allocation3] sm:$0x80] %vm560, %v1050
    %1053 = vst.msk [vmem:[%s4 - $0x6] sm:$0x80] %vm560, %v1050
    %1055 = vrot.lane.b32.xlu0 %v1041, 96
    %v1056 = vpop.permute.xlu0 %1055
    %1058 = vst.msk [vmem:[%s4 - $0x4] sm:$0x80] %vm560, %v1056
    %v1059 = vld [vmem:[#allocation3] sm:$0xff]
    %v1060 = vld [vmem:[#allocation4 + $0xa8] sm:$0xff]
    %v1061 = vld [vmem:[#allocation4 + $0xb0] sm:$0xff]
    %v1062 = vld [vmem:[#allocation4 + $0xb8] sm:$0xff]
    %v1063 = vld [vmem:[#allocation4 + $0xc0] sm:$0xff]
    %v1064 = vld [vmem:[#allocation4 + $0xc8] sm:$0x1]
    %v1065 = vperm.slane %v1064, 0
    %v1067 = vsel %vm75, %v1059, 0
    %1069 = vmatpush.msra.mxu0 0.0
    %1070 = vmatpush.msra.mxu0 0.0
    %1071 = vmatpush.msra.mxu0 0.0
    %1072 = vmatpush.msra.mxu0 0.0
    %1073 = vmatpush.msra.mxu0 0.0
    %1074 = vmatpush.msra.mxu0 0.0
    %1075 = vmatpush.msra.mxu0 0.0
    %1076 = vmatpush.msra.mxu0 0.0
    %1077 = vmatpush.msra.mxu0 0.0
    %1078 = vmatpush.msra.mxu0 0.0
    %1079 = vmatpush.msra.mxu0 0.0
    %1080 = vmatpush.msra.mxu0 0.0
    %1081 = vmatpush.msra.mxu0 %v1063
    %1082 = vmatpush.msra.mxu0 %v1062
    %1083 = vmatpush.msra.mxu0 %v1061
    %1084 = vmatpush.msra.mxu0 %v1060
    %1085 = vmatmul.f32.gmra.mxu0 %v1067
    %v1086 = vpop.f32.mrf.mxu0
    %v1087 = vadd.f32 %v1065, %v1086
    %1088 = vdwg.mxu0
    %v1089 = vmax.f32 %v1087, 0.0
    %v1090 = vld [vmem:[#allocation4 + $0xd0] sm:$0xff]
    %v1091 = vld [vmem:[#allocation4 + $0xd8] sm:$0xff]
    %v1092 = vld [vmem:[#allocation4 + $0xe0] sm:$0xff]
    %v1093 = vld [vmem:[#allocation4 + $0xe8] sm:$0xff]
    %v1094 = vld [vmem:[#allocation4 + $0xf0] sm:$0xff]
    %v1095 = vld [vmem:[#allocation4 + $0xf8] sm:$0xff]
    %v1096 = vld [vmem:[#allocation4 + $0x100] sm:$0xff]
    %v1097 = vld [vmem:[#allocation4 + $0x108] sm:$0xff]
    %v1098 = vld [vmem:[#allocation4 + $0x110] sm:$0x1]
    %v1099 = vperm.slane %v1098, 0
    %vm1100 = vcmask 523264
    %v1102 = vsel %vm1100, %v1089, 0
    %1104 = vmatpush.msra.mxu0 0.0
    %1105 = vmatpush.msra.mxu0 0.0
    %1106 = vmatpush.msra.mxu0 0.0
    %1107 = vmatpush.msra.mxu0 0.0
    %1108 = vmatpush.msra.mxu0 0.0
    %1109 = vmatpush.msra.mxu0 0.0
    %1110 = vmatpush.msra.mxu0 0.0
    %1111 = vmatpush.msra.mxu0 0.0
    %1112 = vmatpush.msra.mxu0 %v1097
    %1113 = vmatpush.msra.mxu0 %v1096
    %1114 = vmatpush.msra.mxu0 %v1095
    %1115 = vmatpush.msra.mxu0 %v1094
    %1116 = vmatpush.msra.mxu0 %v1093
    %1117 = vmatpush.msra.mxu0 %v1092
    %1118 = vmatpush.msra.mxu0 %v1091
    %1119 = vmatpush.msra.mxu0 %v1090
    %1120 = vmatmul.f32.gmra.mxu0 %v1102
    %v1121 = vpop.f32.mrf.mxu0
    %v1122 = vadd.f32 %v1099, %v1121
    %1123 = vdwg.mxu0
    %1124 = vst [vmem:[%s3] sm:$0xff] %v1122
    // Predicated region
    $region18: #{net_forward.1} parent=1 // pred_check
      _
    $region19: #{net_forward.1} parent=1 // pred_check_branch
      %1126 = sbr.rel (0) target = $region21
    $region20: #{net_forward.1} parent=1 // pred_region
      _
    $region21: #{net_forward.1} parent=1 // pred_fallthru
      _
    // Predicated region
    $region22: #{net_forward.1} parent=1 // pred_check
      _
    $region23: #{net_forward.1} parent=1 // pred_check_branch
      %1128 = sbr.rel (0) target = $region25
    $region24: #{net_forward.1} parent=1 // pred_region
      _
    $region25: #{net_forward.1} parent=1 // pred_fallthru
      _
    // Predicated region
    $region26: #{net_forward.1} parent=1 // pred_check
      _
    $region27: #{net_forward.1} parent=1 // pred_check_branch
      %1130 = sbr.rel (0) target = $region29
    $region28: #{net_forward.1} parent=1 // pred_region
      _
    $region29: #{net_forward.1} parent=1 // pred_fallthru
      _
    // Predicated region
    $region30: #{net_forward.1} parent=1 // pred_check
      _
    $region31: #{net_forward.1} parent=1 // pred_check_branch
      %1132 = sbr.rel (0) target = $region33
    $region32: #{net_forward.1} parent=1 // pred_region
      _
    $region33: #{net_forward.1} parent=1 // pred_fallthru
      _
    %1133 = vsyncpa [#allocation5], 1

</llo_original>
